<compile_context>
chip_gen: v7x
topology: tpu7x:2x2x1
jax: 0.10.0
libtpu: 0.0.40
codegen_flags: <defaults>
</compile_context>

<pallas_src>
import functools

import jax
import jax.numpy as jnp
from jax.experimental import pallas as pl
from jax.experimental.pallas import tpu as pltpu

LANE = 128


def sdpa_kernel(x_ref, w_ref, out_ref, attn_ref, q_sc, k_sc, v_sc,
                *, ho, ho_p, tq, flatten_attn):
    """One (batch-block, query-tile) grid step.

    x_ref:    (Bt, L, hi)    input tile (resident across the inner q axis)
    w_ref:    (hi, 3*ho_p)   fused [W_q/temperature | W_k | W_v]
    out_ref:  (Bt, tq, ho)   output tile (unpadded ho)
    attn_ref: (Bt, tq, L) or (Bt, 1, tq*L) attention-weight tile
    q_sc/k_sc/v_sc: (Bt, L, ho_p) f32 VMEM scratch, filled at q_idx == 0
    """
    Bt, L, hi = x_ref.shape
    qi = pl.program_id(1)

    @pl.when(qi == 0)
    def _compute_qkv():
        # Single fused MXU matmul for all three projections over the batch block.
        # (Bt, L) -> (Bt*L) reshape is free when L % 8 == 0.
        x2d = x_ref[...].reshape(Bt * L, hi)
        qkv = jnp.dot(x2d, w_ref[...], preferred_element_type=jnp.float32)
        qkv = qkv.reshape(Bt, L, 3 * ho_p)
        q_sc[...] = qkv[:, :, :ho_p]           # already scaled by 1/temperature
        k_sc[...] = qkv[:, :, ho_p:2 * ho_p]
        v_sc[...] = qkv[:, :, 2 * ho_p:]

    q_start = pl.multiple_of(qi * tq, tq)
    q = q_sc[:, pl.ds(q_start, tq), :]         # (Bt, tq, ho_p)
    k = k_sc[...]                              # (Bt, L,  ho_p)
    v = v_sc[...]                              # (Bt, L,  ho_p)

    # Batched scores: contract the last dims directly (no explicit transpose / XLU).
    scores = jnp.einsum("bqd,bkd->bqk", q, k, preferred_element_type=jnp.float32)

    # Numerically stable row softmax; exact reciprocal keeps the 1e-5 match.
    m = jnp.max(scores, axis=-1, keepdims=True)
    e = jnp.exp(scores - m)
    denom = jnp.sum(e, axis=-1, keepdims=True)
    attn = e * pl.reciprocal(denom, approx=False)

    # TODO(synk): attn_dropout (train-mode RNG) not implemented -- eval-mode identity.
    # TODO(synk): optional `mask` argument not implemented (forward uses mask=None).

    out = jnp.einsum("bqk,bkd->bqd", attn, v, preferred_element_type=jnp.float32)

    # Padded ho..ho_p columns of q/k/v are exactly zero, so slicing is exact.
    out_ref[...] = out[:, :, :ho].astype(out_ref.dtype)
    if flatten_attn:
        attn_ref[...] = attn.reshape(Bt, 1, tq * L).astype(attn_ref.dtype)
    else:
        attn_ref[...] = attn.astype(attn_ref.dtype)


def _plan_tiles(B, L, hi, ho, ho_p, kind):
    """Pick (block_b, tq, vmem_limit) from an explicit per-generation VMEM budget."""
    two_tc = "v7" in kind                        # v7x: 2 TensorCores per chip
    if "v7" in kind:
        budget, vmem_limit = 24 << 20, 48 << 20  # 64 MiB physical VMEM per TC
    elif "v6" in kind:
        budget, vmem_limit = 40 << 20, 64 << 20  # 128 MiB physical
    elif "v5" in kind:
        budget, vmem_limit = 24 << 20, 64 << 20  # 128 MiB physical, small default scope
    else:                                        # unknown chip -> conservative
        budget, vmem_limit = 20 << 20, 48 << 20

    # Query tile: single tile when L < 128 (enables the lane-dense flat attn store),
    # otherwise the largest 8-aligned divisor of L up to 512.
    if L < 128:
        tq = L
    else:
        tq = L
        for cand in (512, 256, 128, 64, 32, 16, 8):
            if L % cand == 0:
                tq = cand
                break

    # Batch tile: single-TC chips take the whole batch in one grid step (splitting is
    # a serial loop there); v7x splits across its two TensorCores.
    bb = B // 2 if (two_tc and B % 2 == 0 and B >= 2) else B

    f = 4  # f32 bytes

    def est(bb_, tq_):
        x_t = 2 * bb_ * L * hi * f               # double-buffered input tile
        w_t = hi * 3 * ho_p * f                  # fused weights (constant block)
        out_t = 2 * bb_ * tq_ * ho * f           # double-buffered output tile
        a_t = 2 * bb_ * tq_ * L * f              # double-buffered attn tile
        sc = 3 * bb_ * L * ho_p * f              # q/k/v scratch
        tmp = 4 * bb_ * tq_ * max(L, ho_p) * f   # scores/e/attn/out live temporaries
        return x_t + w_t + out_t + a_t + sc + tmp

    # Shrink the query tile first (keeps the fused QKV matmul wide), then the batch tile.
    while est(bb, tq) > budget:
        if L >= 128 and tq > 8 and tq % 16 == 0 and L % (tq // 2) == 0:
            tq //= 2
        elif bb > 1 and bb % 2 == 0:
            bb //= 2
        else:
            break

    return bb, tq, vmem_limit


def scaled_dot_product_attention(inp, w_q, w_k, w_v, temperature):
    """inp: [B, L, hi]; w_q/w_k/w_v: [hi, ho] in x @ W form."""
    B, L, hi = inp.shape
    ho = w_q.shape[1]

    # Pad ho to a lane multiple so the fused-QKV slices are lane-aligned; the zero
    # padding contributes exactly 0 to scores/output and is only used in-kernel.
    ho_p = ((ho + LANE - 1) // LANE) * LANE
    pad = ((0, 0), (0, ho_p - ho))
    inv_temperature = jnp.asarray(1.0 / float(temperature), dtype=w_q.dtype)
    w_fused = jnp.concatenate(
        [jnp.pad(w_q * inv_temperature, pad),   # fold 1/temperature into W_q
         jnp.pad(w_k, pad),
         jnp.pad(w_v, pad)],
        axis=1)                                  # [hi, 3*ho_p]

    try:
        kind = jax.devices()[0].device_kind.lower()
    except Exception:
        kind = ""
    bb, tq, vmem_limit = _plan_tiles(B, L, hi, ho, ho_p, kind)

    flatten_attn = L < 128        # lane-dense attn writeback for small L
    if flatten_attn:
        tq = L                    # one query tile -> whole (L, L) row block per batch

    assert B % bb == 0 and L % tq == 0
    grid = (B // bb, L // tq)

    x_spec = pl.BlockSpec((bb, L, hi), lambda b, q: (b, 0, 0))
    try:
        # Constant block index -> single-buffer the weights to save VMEM.
        w_spec = pl.BlockSpec((hi, 3 * ho_p), lambda b, q: (0, 0),
                              pipeline_mode=pl.Buffered(1))
    except Exception:
        w_spec = pl.BlockSpec((hi, 3 * ho_p), lambda b, q: (0, 0))

    out_spec = pl.BlockSpec((bb, tq, ho), lambda b, q: (b, q, 0))
    out_shape_main = jax.ShapeDtypeStruct((B, L, ho), inp.dtype)

    if flatten_attn:
        attn_spec = pl.BlockSpec((bb, 1, tq * L), lambda b, q: (b, 0, q))
        attn_shape = jax.ShapeDtypeStruct((B, 1, L * L), inp.dtype)
    else:
        attn_spec = pl.BlockSpec((bb, tq, L), lambda b, q: (b, q, 0))
        attn_shape = jax.ShapeDtypeStruct((B, L, L), inp.dtype)

    grid_spec = pltpu.PrefetchScalarGridSpec(
        num_scalar_prefetch=0,
        grid=grid,
        in_specs=[x_spec, w_spec],
        out_specs=[out_spec, attn_spec],
        scratch_shapes=[pltpu.VMEM((bb, L, ho_p), jnp.float32)] * 3,
    )

    kernel = functools.partial(sdpa_kernel, ho=ho, ho_p=ho_p, tq=tq,
                               flatten_attn=flatten_attn)

    out, attn = pl.pallas_call(
        kernel,
        out_shape=(out_shape_main, attn_shape),
        grid_spec=grid_spec,
        compiler_params=pltpu.CompilerParams(
            dimension_semantics=("parallel", "arbitrary"),
            vmem_limit_bytes=vmem_limit),
    )(inp, w_fused)

    if flatten_attn:
        attn = attn.reshape(B, L, L)   # metadata-only reshape
    return out, attn


def reference(inp, w_q, w_k, w_v, temperature):
    """Pure-JAX reference mirroring the torch forward pass (eval mode, mask=None)."""
    q = inp @ w_q
    k = inp @ w_k
    v = inp @ w_v
    attn = jnp.einsum("bld,bmd->blm", q / temperature, k)
    attn = jax.nn.softmax(attn, axis=-1)
    out = jnp.einsum("blm,bmd->bld", attn, v)
    return out, attn


if __name__ == "__main__":
    key = jax.random.PRNGKey(0)
    B, L, HI, HO = 4, 16, 32, 32
    temperature = float(HO) ** 0.5

    k1, k2, k3, k4 = jax.random.split(key, 4)
    inp = jax.random.normal(k1, (B, L, HI), dtype=jnp.float32)

    # torch Linear-style uniform init (x @ W form).
    bound = 1.0 / (HI ** 0.5)
    w_q = jax.random.uniform(k2, (HI, HO), minval=-bound, maxval=bound, dtype=jnp.float32)
    w_k = jax.random.uniform(k3, (HI, HO), minval=-bound, maxval=bound, dtype=jnp.float32)
    w_v = jax.random.uniform(k4, (HI, HO), minval=-bound, maxval=bound, dtype=jnp.float32)

    out, attn = scaled_dot_product_attention(inp, w_q, w_k, w_v, temperature)
    out = jax.block_until_ready(out)
    attn = jax.block_until_ready(attn)

    ref_out, ref_attn = reference(inp, w_q, w_k, w_v, temperature)
    assert out.shape == (B, L, HO) and attn.shape == (B, L, L)
    assert jnp.allclose(out, ref_out, atol=1e-5, rtol=1e-5)
    assert jnp.allclose(attn, ref_attn, atol=1e-5, rtol=1e-5)

    print("KERNEL_OK")
</pallas_src>

<mosaic_0001>
module attributes {stable_mosaic.version = 11 : i64} {
  func.func @sdpa_kernel(%arg0: i32, %arg1: i32, %arg2: memref<4x16x32xf32, #tpu.memory_space<vmem>>, %arg3: memref<32x384xf32, #tpu.memory_space<vmem>>, %arg4: memref<4x16x32xf32, #tpu.memory_space<vmem>>, %arg5: memref<4x1x256xf32, #tpu.memory_space<vmem>>, %arg6: memref<4x16x128xf32, #tpu.memory_space<vmem>>, %arg7: memref<4x16x128xf32, #tpu.memory_space<vmem>>, %arg8: memref<4x16x128xf32, #tpu.memory_space<vmem>>) attributes {dimension_semantics = [#tpu.dimension_semantics<parallel>, #tpu.dimension_semantics<arbitrary>], iteration_bounds = array<i64: 1, 1>, scalar_prefetch = 0 : i64, scratch_operands = 3 : i64, tpu.core_type = #tpu.core_type<tc>, window_params = [{transform_indices = @transform_0, window_bounds = array<i64: 4, 16, 32>}, {pipeline_mode = #tpu.pipeline_mode<synchronous>, transform_indices = @transform_1, window_bounds = array<i64: 32, 384>}, {transform_indices = @transform_2, window_bounds = array<i64: 4, 16, 32>}, {transform_indices = @transform_3, window_bounds = array<i64: 4, 1, 256>}]} {
    %c0_i32 = arith.constant 0 : i32
    %0 = arith.cmpi eq, %arg1, %c0_i32 : i32
    %1 = arith.extui %0 : i1 to i32
    %c0_i32_0 = arith.constant 0 : i32
    %2 = arith.cmpi ne, %1, %c0_i32_0 : i32
    scf.if %2 {
      %c0_17 = arith.constant 0 : index
      %c0_18 = arith.constant 0 : index
      %c0_19 = arith.constant 0 : index
      %25 = vector.load %arg2[%c0_17, %c0_18, %c0_19] : memref<4x16x32xf32, #tpu.memory_space<vmem>>, vector<4x16x32xf32>
      %26 = vector.shape_cast %25 : vector<4x16x32xf32> to vector<64x32xf32>
      %c0_20 = arith.constant 0 : index
      %c0_21 = arith.constant 0 : index
      %27 = vector.load %arg3[%c0_20, %c0_21] : memref<32x384xf32, #tpu.memory_space<vmem>>, vector<32x384xf32>
      %cst_22 = arith.constant dense<0.000000e+00> : vector<64x384xf32>
      %28 = tpu.matmul %26, %27, %cst_22 {dimension_numbers = #tpu.dot_dimension_numbers<[1], [0], [0], [1], [0, 0, 1, 1], [], []>} : vector<64x32xf32>, vector<32x384xf32>, vector<64x384xf32> -> vector<64x384xf32>
      %29 = vector.shape_cast %28 : vector<64x384xf32> to vector<4x16x384xf32>
      %30 = vector.extract_strided_slice %29 {offsets = [0, 0, 0], sizes = [4, 16, 128], strides = [1, 1, 1]} : vector<4x16x384xf32> to vector<4x16x128xf32>
      %c0_23 = arith.constant 0 : index
      %c0_24 = arith.constant 0 : index
      %c0_25 = arith.constant 0 : index
      %31 = vector.load %arg6[%c0_23, %c0_24, %c0_25] : memref<4x16x128xf32, #tpu.memory_space<vmem>>, vector<4x16x128xf32>
      tpu.vector_store %arg6[%c0_23, %c0_24, %c0_25], %30 {strides = array<i32>} : memref<4x16x128xf32, #tpu.memory_space<vmem>>, vector<4x16x128xf32>,
      %32 = vector.extract_strided_slice %29 {offsets = [0, 0, 128], sizes = [4, 16, 128], strides = [1, 1, 1]} : vector<4x16x384xf32> to vector<4x16x128xf32>
      %c0_26 = arith.constant 0 : index
      %c0_27 = arith.constant 0 : index
      %c0_28 = arith.constant 0 : index
      %33 = vector.load %arg7[%c0_26, %c0_27, %c0_28] : memref<4x16x128xf32, #tpu.memory_space<vmem>>, vector<4x16x128xf32>
      tpu.vector_store %arg7[%c0_26, %c0_27, %c0_28], %32 {strides = array<i32>} : memref<4x16x128xf32, #tpu.memory_space<vmem>>, vector<4x16x128xf32>,
      %34 = vector.extract_strided_slice %29 {offsets = [0, 0, 256], sizes = [4, 16, 128], strides = [1, 1, 1]} : vector<4x16x384xf32> to vector<4x16x128xf32>
      %c0_29 = arith.constant 0 : index
      %c0_30 = arith.constant 0 : index
      %c0_31 = arith.constant 0 : index
      %35 = vector.load %arg8[%c0_29, %c0_30, %c0_31] : memref<4x16x128xf32, #tpu.memory_space<vmem>>, vector<4x16x128xf32>
      tpu.vector_store %arg8[%c0_29, %c0_30, %c0_31], %34 {strides = array<i32>} : memref<4x16x128xf32, #tpu.memory_space<vmem>>, vector<4x16x128xf32>,
    } else {
    }
    %c16_i32 = arith.constant 16 : i32
    %3 = arith.muli %arg1, %c16_i32 : i32
    %4 = tpu.assume_multiple %3, 16 : i32
    %c0 = arith.constant 0 : index
    %5 = arith.index_cast %4 : i32 to index
    %c0_1 = arith.constant 0 : index
    %6 = vector.load %arg6[%c0, %5, %c0_1] : memref<4x16x128xf32, #tpu.memory_space<vmem>>, vector<4x16x128xf32>
    %c0_2 = arith.constant 0 : index
    %c0_3 = arith.constant 0 : index
    %c0_4 = arith.constant 0 : index
    %7 = vector.load %arg7[%c0_2, %c0_3, %c0_4] : memref<4x16x128xf32, #tpu.memory_space<vmem>>, vector<4x16x128xf32>
    %c0_5 = arith.constant 0 : index
    %c0_6 = arith.constant 0 : index
    %c0_7 = arith.constant 0 : index
    %8 = vector.load %arg8[%c0_5, %c0_6, %c0_7] : memref<4x16x128xf32, #tpu.memory_space<vmem>>, vector<4x16x128xf32>
    "tpu.trace_start"() <{level = 10 : i32, message = "bqd,bkd->bqk"}> : () -> ()
    %cst = arith.constant dense<0.000000e+00> : vector<4x16x16xf32>
    %9 = tpu.matmul %6, %7, %cst {dimension_numbers = #tpu.dot_dimension_numbers<[2], [2], [1], [1], [0, 0, 0, 1, 1, 1], [0], [0]>} : vector<4x16x128xf32>, vector<4x16x128xf32>, vector<4x16x16xf32> -> vector<4x16x16xf32>
    "tpu.trace_stop"() : () -> ()
    %cst_8 = arith.constant dense<0xFF800000> : vector<4x16xf32>
    %10 = vector.multi_reduction <maximumf>, %9, %cst_8 [2] : vector<4x16x16xf32> to vector<4x16xf32>
    %11 = vector.shape_cast %10 : vector<4x16xf32> to vector<4x16x1xf32>
    %12 = vector.broadcast %11 : vector<4x16x1xf32> to vector<4x16x16xf32>
    %13 = arith.subf %9, %12 : vector<4x16x16xf32>
    %14 = math.exp %13 : vector<4x16x16xf32>
    %cst_9 = arith.constant dense<0.000000e+00> : vector<4x16xf32>
    %15 = vector.multi_reduction <add>, %14, %cst_9 [2] : vector<4x16x16xf32> to vector<4x16xf32>
    %16 = vector.shape_cast %15 : vector<4x16xf32> to vector<4x16x1xf32>
    %17 = tpu.reciprocal %16 : vector<4x16x1xf32> -> vector<4x16x1xf32>
    %18 = vector.broadcast %17 : vector<4x16x1xf32> to vector<4x16x16xf32>
    %19 = arith.mulf %14, %18 : vector<4x16x16xf32>
    "tpu.trace_start"() <{level = 10 : i32, message = "bqk,bkd->bqd"}> : () -> ()
    %cst_10 = arith.constant dense<0.000000e+00> : vector<4x16x128xf32>
    %20 = tpu.matmul %19, %8, %cst_10 {dimension_numbers = #tpu.dot_dimension_numbers<[2], [1], [1], [2], [0, 0, 0, 1, 1, 2], [0], [0]>} : vector<4x16x16xf32>, vector<4x16x128xf32>, vector<4x16x128xf32> -> vector<4x16x128xf32>
    "tpu.trace_stop"() : () -> ()
    %21 = vector.extract_strided_slice %20 {offsets = [0, 0, 0], sizes = [4, 16, 32], strides = [1, 1, 1]} : vector<4x16x128xf32> to vector<4x16x32xf32>
    %c0_11 = arith.constant 0 : index
    %c0_12 = arith.constant 0 : index
    %c0_13 = arith.constant 0 : index
    %22 = vector.load %arg4[%c0_11, %c0_12, %c0_13] : memref<4x16x32xf32, #tpu.memory_space<vmem>>, vector<4x16x32xf32>
    tpu.vector_store %arg4[%c0_11, %c0_12, %c0_13], %21 {strides = array<i32>} : memref<4x16x32xf32, #tpu.memory_space<vmem>>, vector<4x16x32xf32>,
    %23 = vector.shape_cast %19 : vector<4x16x16xf32> to vector<4x1x256xf32>
    %c0_14 = arith.constant 0 : index
    %c0_15 = arith.constant 0 : index
    %c0_16 = arith.constant 0 : index
    %24 = vector.load %arg5[%c0_14, %c0_15, %c0_16] : memref<4x1x256xf32, #tpu.memory_space<vmem>>, vector<4x1x256xf32>
    tpu.vector_store %arg5[%c0_14, %c0_15, %c0_16], %23 {strides = array<i32>} : memref<4x1x256xf32, #tpu.memory_space<vmem>>, vector<4x1x256xf32>,
    return
  }
  func.func @transform_0(%arg0: i32, %arg1: i32) -> (i32, i32, i32) {
    %c0_i32 = arith.constant 0 : i32
    %c0_i32_0 = arith.constant 0 : i32
    %c0_i32_1 = arith.constant 0 : i32
    return %arg0, %c0_i32, %c0_i32_0 : i32, i32, i32
  }
  func.func @transform_1(%arg0: i32, %arg1: i32) -> (i32, i32) {
    %c0_i32 = arith.constant 0 : i32
    %c0_i32_0 = arith.constant 0 : i32
    %c0_i32_1 = arith.constant 0 : i32
    return %c0_i32, %c0_i32_0 : i32, i32
  }
  func.func @transform_2(%arg0: i32, %arg1: i32) -> (i32, i32, i32) {
    %c0_i32 = arith.constant 0 : i32
    %c0_i32_0 = arith.constant 0 : i32
    return %arg0, %arg1, %c0_i32 : i32, i32, i32
  }
  func.func @transform_3(%arg0: i32, %arg1: i32) -> (i32, i32, i32) {
    %c0_i32 = arith.constant 0 : i32
    %c0_i32_0 = arith.constant 0 : i32
    return %arg0, %c0_i32, %arg1 : i32, i32, i32
  }
}

</mosaic_0001>

<llo_original>
// kernel: tpu_custom_call.1
$region0: #{tpu_custom_call.1}
  #allocation0 [shape = 'u32[]', space=smem, size = 0x4, offset = 0x4, fixed_abs, tag = 'smem constant byte address 0x4 - core index']
  #allocation1 [shape = 'u32[144,128]{1,0:T(1,128)}', space=vmem, size = 0x12000, scoped, tag = 'internal scratch']
  #allocation2 [shape = 'f32[4,16,128]{2,1,0:T(8,128)}', space=vmem, size = 0x8000, scoped, tag = 'scratch operand']
  #allocation3 [shape = 'f32[4,16,128]{2,1,0:T(8,128)}', space=vmem, size = 0x8000, scoped, tag = 'scratch operand']
  #allocation4 [shape = 'f32[4,16,128]{2,1,0:T(8,128)}', space=vmem, size = 0x8000, scoped, tag = 'scratch operand']
  %s0 = inlined_call_operand.hbm [shape: f32[4,16,32], index: 0, kind: input, shape index: {}]
  %s1 = inlined_call_operand.hbm [shape: f32[32,384], index: 1, kind: input, shape index: {}]
  %s2 = inlined_call_operand.hbm [shape: f32[4,16,32], index: 2, kind: output, shape index: {0}]
  %s3 = inlined_call_operand.hbm [shape: f32[4,1,256], index: 3, kind: output, shape index: {1}]
  %4 = xla_tuple %s2, %s3
  %s5 = sld [smem:[#allocation0]]
  $region38: #{tpu_custom_call.1} parent=0
    _
  %s7 = ssub.s32 1, %s5
  %s8 = scalar_select 0, %s7, %s5
  $region1: #{tpu_custom_call.1} parent=0
    #allocation5 [shape = 'u8[32768]{0}', space=vmem, size = 0x8000, scoped, tag = 'input window, operand 0, single buffered']
    #allocation6 [shape = 's32[1]{0}', space=sflag, size = 0x4, scoped, tag = 'scoped memory for tpu_custom_call.1']
    #allocation7 [shape = 's32[1]{0}', space=sflag, size = 0x4, scoped, tag = 'scoped memory for tpu_custom_call.1']
    #allocation8 [shape = 'u8[49152]{0}', space=vmem, size = 0xc000, scoped, tag = 'input window, operand 1, single buffered']
    #allocation9 [shape = 's32[1]{0}', space=sflag, size = 0x4, scoped, tag = 'scoped memory for tpu_custom_call.1']
    #allocation10 [shape = 'u8[32768]{0}', space=vmem, size = 0x8000, scoped, tag = 'output window, operand 0, single buffered']
    #allocation11 [shape = 'u8[4096]{0}', space=vmem, size = 0x1000, scoped, tag = 'output window, operand 1, single buffered']
    #allocation12 [shape = 's32[1]{0}', space=sflag, size = 0x4, scoped, tag = 'scoped memory for tpu_custom_call.1']
    %9 = vsyncpa [#allocation6], 0
    %10 = vsyncpa [#allocation9], 0
    %11 = vsyncpa [#allocation7], 0
    %12 = vsyncpa [#allocation12], 0
    // Predicated region
    $region2: #{tpu_custom_call.1} parent=1 // pred_check
      _
    $region3: #{tpu_custom_call.1} parent=1 // pred_check_branch
      %14 = sbr.rel (0) target = $region5
    $region4: #{tpu_custom_call.1} parent=1 // pred_region
      %s16 = ssub.s32 1024, 1024
      %17 = vsyncadd [#allocation6], %s16
      %s18 = sshll.u32 [#allocation5], 4
      %s19 = int_to_ptr.vmem [resolvable:$true] %s18
      %24 = dma.hbm_to_vmem [thread:$0]  %s0, 1024, %s19, [#allocation6], 128, 128, 8
    $region5: #{tpu_custom_call.1} parent=1 // pred_fallthru
      _
    // Predicated region
    $region6: #{tpu_custom_call.1} parent=1 // pred_check
      _
    $region7: #{tpu_custom_call.1} parent=1 // pred_check_branch
      %26 = sbr.rel (0) target = $region9
    $region8: #{tpu_custom_call.1} parent=1 // pred_region
      %s28 = ssub.s32 1536, 1536
      %29 = vsyncadd [#allocation9], %s28
      %s30 = sshll.u32 [#allocation8], 4
      %s31 = int_to_ptr.vmem [resolvable:$true] %s30
      %36 = dma.hbm_to_vmem [thread:$0]  %s1, 1536, %s31, [#allocation9], 384, 384, 24
    $region9: #{tpu_custom_call.1} parent=1 // pred_fallthru
      _
    // Predicated region
    $region10: #{tpu_custom_call.1} parent=1 // pred_check
      _
    $region11: #{tpu_custom_call.1} parent=1 // pred_check_branch
      %38 = sbr.rel (0) target = $region13
    $region12: #{tpu_custom_call.1} parent=1 // pred_region
      %39 = dma.done [#allocation6], 1024
    $region13: #{tpu_custom_call.1} parent=1 // pred_fallthru
      _
    // Predicated region
    $region14: #{tpu_custom_call.1} parent=1 // pred_check
      _
    $region15: #{tpu_custom_call.1} parent=1 // pred_check_branch
      %41 = sbr.rel (0) target = $region17
    $region16: #{tpu_custom_call.1} parent=1 // pred_region
      %42 = dma.done [#allocation9], 1536
    $region17: #{tpu_custom_call.1} parent=1 // pred_fallthru
      _
    %p43 = scmp.eq.s32.totalorder 0, 0
    // Predicated region
    $region18: #{tpu_custom_call.1} parent=1 // pred_check
      %p44 = pneg %p43
    $region19: #{tpu_custom_call.1} parent=1 // pred_check_branch
      %46 = sbr.rel (%p44) target = $region21
    $region20: #{tpu_custom_call.1} parent=1 // pred_region
      %v47 = vld [vmem:[#allocation5] sm:$0xff]
      %v48 = vld [vmem:[#allocation5 + $0x8] sm:$0xff]
      %v49 = vld [vmem:[#allocation5 + $0x10] sm:$0xff]
      %v50 = vld [vmem:[#allocation5 + $0x18] sm:$0xff]
      %v51 = vld [vmem:[#allocation5 + $0x20] sm:$0xff]
      %v52 = vld [vmem:[#allocation5 + $0x28] sm:$0xff]
      %v53 = vld [vmem:[#allocation5 + $0x30] sm:$0xff]
      %v54 = vld [vmem:[#allocation5 + $0x38] sm:$0xff]
      %v55 = vld [vmem:[#allocation8] sm:$0xff]
      %v56 = vld [vmem:[#allocation8 + $0x8] sm:$0xff]
      %v57 = vld [vmem:[#allocation8 + $0x10] sm:$0xff]
      %v58 = vld [vmem:[#allocation8 + $0x18] sm:$0xff]
      %v59 = vld [vmem:[#allocation8 + $0x20] sm:$0xff]
      %v60 = vld [vmem:[#allocation8 + $0x28] sm:$0xff]
      %v61 = vld [vmem:[#allocation8 + $0x30] sm:$0xff]
      %v62 = vld [vmem:[#allocation8 + $0x38] sm:$0xff]
      %v63 = vld [vmem:[#allocation8 + $0x40] sm:$0xff]
      %v64 = vld [vmem:[#allocation8 + $0x48] sm:$0xff]
      %v65 = vld [vmem:[#allocation8 + $0x50] sm:$0xff]
      %v66 = vld [vmem:[#allocation8 + $0x58] sm:$0xff]
      %vm67 = vcmask 261120
      %v69 = vsel %vm67, %v47, 0
      %v72 = vsel %vm67, %v48, 0
      %v75 = vsel %vm67, %v49, 0
      %v78 = vsel %vm67, %v50, 0
      %v81 = vsel %vm67, %v51, 0
      %v84 = vsel %vm67, %v52, 0
      %v87 = vsel %vm67, %v53, 0
      %v90 = vsel %vm67, %v54, 0
      %92 = vmatprep.subr.mxu0 %v56
      %93 = vmatpush1.msra.mxu0 %v55
      %94 = vmatprep.subr.mxu0 %v59
      %95 = vmatpush1.msra.mxu0 %v58
      %96 = vmatprep.subr.mxu0 %v62
      %97 = vmatpush1.msra.mxu0 %v61
      %98 = vmatprep.subr.mxu0 %v65
      %99 = vmatpush1.msra.mxu0 %v64
      %100 = vmatprep.subr.mxu0 0.0
      %101 = vmatpush1.msra.mxu0 0.0
      %102 = vmatprep.subr.mxu0 0.0
      %103 = vmatpush1.msra.mxu0 0.0
      %104 = vmatprep.subr.mxu0 0.0
      %105 = vmatpush1.msra.mxu0 0.0
      %106 = vmatprep.subr.mxu0 0.0
      %107 = vmatpush1.msra.mxu0 0.0
      %108 = vmatprep.subr.mxu0 0.0
      %109 = vmatpush1.msra.mxu0 0.0
      %110 = vmatprep.subr.mxu0 0.0
      %111 = vmatpush1.msra.mxu0 0.0
      %112 = vmatprep.subr.mxu0 0.0
      %113 = vmatpush1.msra.mxu0 0.0
      %114 = vmatprep.subr.mxu0 0.0
      %115 = vmatpush1.msra.mxu0 0.0
      %116 = vmatprep.subr.mxu0 0.0
      %117 = vmatpush1.msra.mxu0 0.0
      %118 = vmatprep.subr.mxu0 0.0
      %119 = vmatpush1.msra.mxu0 0.0
      %120 = vmatprep.subr.mxu0 0.0
      %121 = vmatpush1.msra.mxu0 0.0
      %122 = vmatprep.subr.mxu0 0.0
      %123 = vmatpush1.msra.mxu0 0.0
      %124 = vmatprep.subr.mxu0 0.0
      %125 = vmatpush1.msra.mxu0 0.0
      %126 = vmatprep.subr.mxu0 0.0
      %127 = vmatpush1.msra.mxu0 0.0
      %128 = vmatprep.subr.mxu0 0.0
      %129 = vmatpush1.msra.mxu0 0.0
      %130 = vmatprep.subr.mxu0 0.0
      %131 = vmatpush1.msra.mxu0 0.0
      %132 = vmatprep.subr.mxu0 0.0
      %133 = vmatpush1.msra.mxu0 0.0
      %134 = vmatprep.subr.mxu0 0.0
      %135 = vmatpush1.msra.mxu0 0.0
      %136 = vmatprep.subr.mxu0 0.0
      %137 = vmatpush1.msra.mxu0 0.0
      %138 = vmatprep.subr.mxu0 0.0
      %139 = vmatpush1.msra.mxu0 0.0
      %140 = vmatprep.subr.mxu0 0.0
      %141 = vmatpush1.msra.mxu0 0.0
      %142 = vmatprep.subr.mxu0 0.0
      %143 = vmatpush1.msra.mxu0 0.0
      %144 = vmatprep.subr.mxu0 0.0
      %145 = vmatpush1.msra.mxu0 0.0
      %146 = vmatprep.subr.mxu0 0.0
      %147 = vmatpush1.msra.mxu0 0.0
      %148 = vmatprep.subr.mxu0 0.0
      %149 = vmatpush1.msra.mxu0 0.0
      %150 = vmatprep.subr.mxu0 0.0
      %151 = vmatpush1.msra.mxu0 0.0
      %152 = vmatprep.subr.mxu0 0.0
      %153 = vmatpush1.msra.mxu0 0.0
      %154 = vmatprep.subr.mxu0 0.0
      %155 = vmatpush1.msra.mxu0 0.0
      %156 = vmatprep.mubr.f32.mxu0 0.0
      %157 = vmatmul.mubr.f32.gmra.mrb[0].mxu0 %v69
      %v158 = vpop.f32.mrb[0].mxu0
      %v159 = vadd.f32 0.0, %v158
      %v160 = vpop.f32.mrb[0].mxu0
      %v161 = vadd.f32 0.0, %v160
      %162 = vmatprep.mubr.f32.mxu0 0.0
      %163 = vmatmul.mubr.f32.gmra.mrb[0].mxu0 %v72
      %v164 = vpop.f32.mrb[0].mxu0
      %v165 = vadd.f32 0.0, %v164
      %v166 = vpop.f32.mrb[0].mxu0
      %v167 = vadd.f32 0.0, %v166
      %168 = vmatprep.mubr.f32.mxu0 0.0
      %169 = vmatmul.mubr.f32.gmra.mrb[0].mxu0 %v75
      %v170 = vpop.f32.mrb[0].mxu0
      %v171 = vadd.f32 0.0, %v170
      %v172 = vpop.f32.mrb[0].mxu0
      %v173 = vadd.f32 0.0, %v172
      %174 = vmatprep.mubr.f32.mxu0 0.0
      %175 = vmatmul.mubr.f32.gmra.mrb[0].mxu0 %v78
      %v176 = vpop.f32.mrb[0].mxu0
      %v177 = vadd.f32 0.0, %v176
      %v178 = vpop.f32.mrb[0].mxu0
      %v179 = vadd.f32 0.0, %v178
      %180 = vmatprep.mubr.f32.mxu0 0.0
      %181 = vmatmul.mubr.f32.gmra.mrb[0].mxu0 %v81
      %v182 = vpop.f32.mrb[0].mxu0
      %v183 = vadd.f32 0.0, %v182
      %v184 = vpop.f32.mrb[0].mxu0
      %v185 = vadd.f32 0.0, %v184
      %186 = vmatprep.mubr.f32.mxu0 0.0
      %187 = vmatmul.mubr.f32.gmra.mrb[0].mxu0 %v84
      %v188 = vpop.f32.mrb[0].mxu0
      %v189 = vadd.f32 0.0, %v188
      %v190 = vpop.f32.mrb[0].mxu0
      %v191 = vadd.f32 0.0, %v190
      %192 = vmatprep.mubr.f32.mxu0 0.0
      %193 = vmatmul.mubr.f32.gmra.mrb[0].mxu0 %v87
      %v194 = vpop.f32.mrb[0].mxu0
      %v195 = vadd.f32 0.0, %v194
      %v196 = vpop.f32.mrb[0].mxu0
      %v197 = vadd.f32 0.0, %v196
      %198 = vmatprep.mubr.f32.mxu0 0.0
      %199 = vmatmul.mubr.f32.gmra.mrb[0].mxu0 %v90
      %v200 = vpop.f32.mrb[0].mxu0
      %v201 = vadd.f32 0.0, %v200
      %v202 = vpop.f32.mrb[0].mxu0
      %v203 = vadd.f32 0.0, %v202
      %204 = vdwg.mxu0
      %205 = vmatprep.subr.mxu0 0.0
      %206 = vmatpush1.msra.mxu0 %v57
      %207 = vmatprep.subr.mxu0 0.0
      %208 = vmatpush1.msra.mxu0 %v60
      %209 = vmatprep.subr.mxu0 0.0
      %210 = vmatpush1.msra.mxu0 %v63
      %211 = vmatprep.subr.mxu0 0.0
      %212 = vmatpush1.msra.mxu0 %v66
      %213 = vmatprep.subr.mxu0 0.0
      %214 = vmatpush1.msra.mxu0 0.0
      %215 = vmatprep.subr.mxu0 0.0
      %216 = vmatpush1.msra.mxu0 0.0
      %217 = vmatprep.subr.mxu0 0.0
      %218 = vmatpush1.msra.mxu0 0.0
      %219 = vmatprep.subr.mxu0 0.0
      %220 = vmatpush1.msra.mxu0 0.0
      %221 = vmatprep.subr.mxu0 0.0
      %222 = vmatpush1.msra.mxu0 0.0
      %223 = vmatprep.subr.mxu0 0.0
      %224 = vmatpush1.msra.mxu0 0.0
      %225 = vmatprep.subr.mxu0 0.0
      %226 = vmatpush1.msra.mxu0 0.0
      %227 = vmatprep.subr.mxu0 0.0
      %228 = vmatpush1.msra.mxu0 0.0
      %229 = vmatprep.subr.mxu0 0.0
      %230 = vmatpush1.msra.mxu0 0.0
      %231 = vmatprep.subr.mxu0 0.0
      %232 = vmatpush1.msra.mxu0 0.0
      %233 = vmatprep.subr.mxu0 0.0
      %234 = vmatpush1.msra.mxu0 0.0
      %235 = vmatprep.subr.mxu0 0.0
      %236 = vmatpush1.msra.mxu0 0.0
      %237 = vmatprep.subr.mxu0 0.0
      %238 = vmatpush1.msra.mxu0 0.0
      %239 = vmatprep.subr.mxu0 0.0
      %240 = vmatpush1.msra.mxu0 0.0
      %241 = vmatprep.subr.mxu0 0.0
      %242 = vmatpush1.msra.mxu0 0.0
      %243 = vmatprep.subr.mxu0 0.0
      %244 = vmatpush1.msra.mxu0 0.0
      %245 = vmatprep.subr.mxu0 0.0
      %246 = vmatpush1.msra.mxu0 0.0
      %247 = vmatprep.subr.mxu0 0.0
      %248 = vmatpush1.msra.mxu0 0.0
      %249 = vmatprep.subr.mxu0 0.0
      %250 = vmatpush1.msra.mxu0 0.0
      %251 = vmatprep.subr.mxu0 0.0
      %252 = vmatpush1.msra.mxu0 0.0
      %253 = vmatprep.subr.mxu0 0.0
      %254 = vmatpush1.msra.mxu0 0.0
      %255 = vmatprep.subr.mxu0 0.0
      %256 = vmatpush1.msra.mxu0 0.0
      %257 = vmatprep.subr.mxu0 0.0
      %258 = vmatpush1.msra.mxu0 0.0
      %259 = vmatprep.subr.mxu0 0.0
      %260 = vmatpush1.msra.mxu0 0.0
      %261 = vmatprep.subr.mxu0 0.0
      %262 = vmatpush1.msra.mxu0 0.0
      %263 = vmatprep.subr.mxu0 0.0
      %264 = vmatpush1.msra.mxu0 0.0
      %265 = vmatprep.subr.mxu0 0.0
      %266 = vmatpush1.msra.mxu0 0.0
      %267 = vmatprep.subr.mxu0 0.0
      %268 = vmatpush1.msra.mxu0 0.0
      %269 = vmatprep.mubr.f32.mxu0 0.0
      %270 = vmatmul.mubr.f32.gmra.mrb[0].mxu0 %v69
      %v271 = vpop.f32.mrb[0].mxu0
      %v272 = vadd.f32 0.0, %v271
      %v273 = vpop.f32.mrb[0].mxu0
      %274 = vmatprep.mubr.f32.mxu0 0.0
      %275 = vmatmul.mubr.f32.gmra.mrb[0].mxu0 %v72
      %v276 = vpop.f32.mrb[0].mxu0
      %v277 = vadd.f32 0.0, %v276
      %v278 = vpop.f32.mrb[0].mxu0
      %279 = vmatprep.mubr.f32.mxu0 0.0
      %280 = vmatmul.mubr.f32.gmra.mrb[0].mxu0 %v75
      %v281 = vpop.f32.mrb[0].mxu0
      %v282 = vadd.f32 0.0, %v281
      %v283 = vpop.f32.mrb[0].mxu0
      %284 = vmatprep.mubr.f32.mxu0 0.0
      %285 = vmatmul.mubr.f32.gmra.mrb[0].mxu0 %v78
      %v286 = vpop.f32.mrb[0].mxu0
      %v287 = vadd.f32 0.0, %v286
      %v288 = vpop.f32.mrb[0].mxu0
      %289 = vmatprep.mubr.f32.mxu0 0.0
      %290 = vmatmul.mubr.f32.gmra.mrb[0].mxu0 %v81
      %v291 = vpop.f32.mrb[0].mxu0
      %v292 = vadd.f32 0.0, %v291
      %v293 = vpop.f32.mrb[0].mxu0
      %294 = vmatprep.mubr.f32.mxu0 0.0
      %295 = vmatmul.mubr.f32.gmra.mrb[0].mxu0 %v84
      %v296 = vpop.f32.mrb[0].mxu0
      %v297 = vadd.f32 0.0, %v296
      %v298 = vpop.f32.mrb[0].mxu0
      %299 = vmatprep.mubr.f32.mxu0 0.0
      %300 = vmatmul.mubr.f32.gmra.mrb[0].mxu0 %v87
      %v301 = vpop.f32.mrb[0].mxu0
      %v302 = vadd.f32 0.0, %v301
      %v303 = vpop.f32.mrb[0].mxu0
      %304 = vmatprep.mubr.f32.mxu0 0.0
      %305 = vmatmul.mubr.f32.gmra.mrb[0].mxu0 %v90
      %v306 = vpop.f32.mrb[0].mxu0
      %v307 = vadd.f32 0.0, %v306
      %v308 = vpop.f32.mrb[0].mxu0
      %309 = vdwg.mxu0
      %310 = vst [vmem:[#allocation2] sm:$0xff] %v159
      %311 = vst [vmem:[#allocation2 + $0x8] sm:$0xff] %v165
      %312 = vst [vmem:[#allocation2 + $0x10] sm:$0xff] %v171
      %313 = vst [vmem:[#allocation2 + $0x18] sm:$0xff] %v177
      %314 = vst [vmem:[#allocation2 + $0x20] sm:$0xff] %v183
      %315 = vst [vmem:[#allocation2 + $0x28] sm:$0xff] %v189
      %316 = vst [vmem:[#allocation2 + $0x30] sm:$0xff] %v195
      %317 = vst [vmem:[#allocation2 + $0x38] sm:$0xff] %v201
      %318 = vst [vmem:[#allocation3] sm:$0xff] %v161
      %319 = vst [vmem:[#allocation3 + $0x8] sm:$0xff] %v167
      %320 = vst [vmem:[#allocation3 + $0x10] sm:$0xff] %v173
      %321 = vst [vmem:[#allocation3 + $0x18] sm:$0xff] %v179
      %322 = vst [vmem:[#allocation3 + $0x20] sm:$0xff] %v185
      %323 = vst [vmem:[#allocation3 + $0x28] sm:$0xff] %v191
      %324 = vst [vmem:[#allocation3 + $0x30] sm:$0xff] %v197
      %325 = vst [vmem:[#allocation3 + $0x38] sm:$0xff] %v203
      %326 = vst [vmem:[#allocation4] sm:$0xff] %v272
      %327 = vst [vmem:[#allocation4 + $0x8] sm:$0xff] %v277
      %328 = vst [vmem:[#allocation4 + $0x10] sm:$0xff] %v282
      %329 = vst [vmem:[#allocation4 + $0x18] sm:$0xff] %v287
      %330 = vst [vmem:[#allocation4 + $0x20] sm:$0xff] %v292
      %331 = vst [vmem:[#allocation4 + $0x28] sm:$0xff] %v297
      %332 = vst [vmem:[#allocation4 + $0x30] sm:$0xff] %v302
      %333 = vst [vmem:[#allocation4 + $0x38] sm:$0xff] %v307
    $region21: #{tpu_custom_call.1} parent=1 // pred_fallthru
      _
    %s334 = smul.u32 0, 16
    %s335 = scalar_lea.vmem [#allocation2], %s334
    %v336 = vld [vmem:[%s335] sm:$0xff]
    %v337 = vld [vmem:[%s335 + $0x8] sm:$0xff]
    %v338 = vld [vmem:[%s335 + $0x10] sm:$0xff]
    %v339 = vld [vmem:[%s335 + $0x18] sm:$0xff]
    %v340 = vld [vmem:[%s335 + $0x20] sm:$0xff]
    %v341 = vld [vmem:[%s335 + $0x28] sm:$0xff]
    %v342 = vld [vmem:[%s335 + $0x30] sm:$0xff]
    %v343 = vld [vmem:[%s335 + $0x38] sm:$0xff]
    %v344 = vld [vmem:[#allocation3] sm:$0xff]
    %v345 = vld [vmem:[#allocation3 + $0x8] sm:$0xff]
    %v346 = vld [vmem:[#allocation3 + $0x10] sm:$0xff]
    %v347 = vld [vmem:[#allocation3 + $0x18] sm:$0xff]
    %v348 = vld [vmem:[#allocation3 + $0x20] sm:$0xff]
    %v349 = vld [vmem:[#allocation3 + $0x28] sm:$0xff]
    %v350 = vld [vmem:[#allocation3 + $0x30] sm:$0xff]
    %v351 = vld [vmem:[#allocation3 + $0x38] sm:$0xff]
    %v352 = vld [vmem:[#allocation4] sm:$0xff]
    %v353 = vld [vmem:[#allocation4 + $0x8] sm:$0xff]
    %v354 = vld [vmem:[#allocation4 + $0x10] sm:$0xff]
    %v355 = vld [vmem:[#allocation4 + $0x18] sm:$0xff]
    %v356 = vld [vmem:[#allocation4 + $0x20] sm:$0xff]
    %v357 = vld [vmem:[#allocation4 + $0x28] sm:$0xff]
    %v358 = vld [vmem:[#allocation4 + $0x30] sm:$0xff]
    %v359 = vld [vmem:[#allocation4 + $0x38] sm:$0xff]
    %360 = vmatprep.subr.mxu0 0.0
    %361 = vmatpush1.xpose.msra.mxu0 %v344
    %362 = vmatprep.subr.mxu0 0.0
    %363 = vmatpush1.xpose.msra.mxu0 %v345
    %364 = vmatprep.subr.mxu0 0.0
    %365 = vmatpush1.xpose.msra.mxu0 0.0
    %366 = vmatprep.subr.mxu0 0.0
    %367 = vmatpush1.xpose.msra.mxu0 0.0
    %368 = vmatprep.subr.mxu0 0.0
    %369 = vmatpush1.xpose.msra.mxu0 0.0
    %370 = vmatprep.subr.mxu0 0.0
    %371 = vmatpush1.xpose.msra.mxu0 0.0
    %372 = vmatprep.subr.mxu0 0.0
    %373 = vmatpush1.xpose.msra.mxu0 0.0
    %374 = vmatprep.subr.mxu0 0.0
    %375 = vmatpush1.xpose.msra.mxu0 0.0
    %376 = vmatprep.subr.mxu0 0.0
    %377 = vmatpush1.xpose.msra.mxu0 0.0
    %378 = vmatprep.subr.mxu0 0.0
    %379 = vmatpush1.xpose.msra.mxu0 0.0
    %380 = vmatprep.subr.mxu0 0.0
    %381 = vmatpush1.xpose.msra.mxu0 0.0
    %382 = vmatprep.subr.mxu0 0.0
    %383 = vmatpush1.xpose.msra.mxu0 0.0
    %384 = vmatprep.subr.mxu0 0.0
    %385 = vmatpush1.xpose.msra.mxu0 0.0
    %386 = vmatprep.subr.mxu0 0.0
    %387 = vmatpush1.xpose.msra.mxu0 0.0
    %388 = vmatprep.subr.mxu0 0.0
    %389 = vmatpush1.xpose.msra.mxu0 0.0
    %390 = vmatprep.subr.mxu0 0.0
    %391 = vmatpush1.xpose.msra.mxu0 0.0
    %392 = vmatprep.subr.mxu0 0.0
    %393 = vmatpush1.xpose.msra.mxu0 0.0
    %394 = vmatprep.subr.mxu0 0.0
    %395 = vmatpush1.xpose.msra.mxu0 0.0
    %396 = vmatprep.subr.mxu0 0.0
    %397 = vmatpush1.xpose.msra.mxu0 0.0
    %398 = vmatprep.subr.mxu0 0.0
    %399 = vmatpush1.xpose.msra.mxu0 0.0
    %400 = vmatprep.subr.mxu0 0.0
    %401 = vmatpush1.xpose.msra.mxu0 0.0
    %402 = vmatprep.subr.mxu0 0.0
    %403 = vmatpush1.xpose.msra.mxu0 0.0
    %404 = vmatprep.subr.mxu0 0.0
    %405 = vmatpush1.xpose.msra.mxu0 0.0
    %406 = vmatprep.subr.mxu0 0.0
    %407 = vmatpush1.xpose.msra.mxu0 0.0
    %408 = vmatprep.subr.mxu0 0.0
    %409 = vmatpush1.xpose.msra.mxu0 0.0
    %410 = vmatprep.subr.mxu0 0.0
    %411 = vmatpush1.xpose.msra.mxu0 0.0
    %412 = vmatprep.subr.mxu0 0.0
    %413 = vmatpush1.xpose.msra.mxu0 0.0
    %414 = vmatprep.subr.mxu0 0.0
    %415 = vmatpush1.xpose.msra.mxu0 0.0
    %416 = vmatprep.subr.mxu0 0.0
    %417 = vmatpush1.xpose.msra.mxu0 0.0
    %418 = vmatprep.subr.mxu0 0.0
    %419 = vmatpush1.xpose.msra.mxu0 0.0
    %420 = vmatprep.subr.mxu0 0.0
    %421 = vmatpush1.xpose.msra.mxu0 0.0
    %422 = vmatprep.subr.mxu0 0.0
    %423 = vmatpush1.xpose.msra.mxu0 0.0
    %424 = vmatprep.mubr.f32.mxu0 0.0
    %425 = vmatmul.mubr.f32.gmra.mrb[0].mxu0 %v336
    %v426 = vpop.f32.mrb[0].mxu0
    %v427 = vadd.f32 0.0, %v426
    %v428 = vpop.f32.mrb[0].mxu0
    %429 = vmatprep.mubr.f32.mxu0 0.0
    %430 = vmatmul.mubr.f32.gmra.mrb[0].mxu0 %v337
    %v431 = vpop.f32.mrb[0].mxu0
    %v432 = vadd.f32 0.0, %v431
    %v433 = vpop.f32.mrb[0].mxu0
    %434 = vdwg.mxu0
    %435 = vmatprep.subr.mxu0 0.0
    %436 = vmatpush1.xpose.msra.mxu0 %v346
    %437 = vmatprep.subr.mxu0 0.0
    %438 = vmatpush1.xpose.msra.mxu0 %v347
    %439 = vmatprep.subr.mxu0 0.0
    %440 = vmatpush1.xpose.msra.mxu0 0.0
    %441 = vmatprep.subr.mxu0 0.0
    %442 = vmatpush1.xpose.msra.mxu0 0.0
    %443 = vmatprep.subr.mxu0 0.0
    %444 = vmatpush1.xpose.msra.mxu0 0.0
    %445 = vmatprep.subr.mxu0 0.0
    %446 = vmatpush1.xpose.msra.mxu0 0.0
    %447 = vmatprep.subr.mxu0 0.0
    %448 = vmatpush1.xpose.msra.mxu0 0.0
    %449 = vmatprep.subr.mxu0 0.0
    %450 = vmatpush1.xpose.msra.mxu0 0.0
    %451 = vmatprep.subr.mxu0 0.0
    %452 = vmatpush1.xpose.msra.mxu0 0.0
    %453 = vmatprep.subr.mxu0 0.0
    %454 = vmatpush1.xpose.msra.mxu0 0.0
    %455 = vmatprep.subr.mxu0 0.0
    %456 = vmatpush1.xpose.msra.mxu0 0.0
    %457 = vmatprep.subr.mxu0 0.0
    %458 = vmatpush1.xpose.msra.mxu0 0.0
    %459 = vmatprep.subr.mxu0 0.0
    %460 = vmatpush1.xpose.msra.mxu0 0.0
    %461 = vmatprep.subr.mxu0 0.0
    %462 = vmatpush1.xpose.msra.mxu0 0.0
    %463 = vmatprep.subr.mxu0 0.0
    %464 = vmatpush1.xpose.msra.mxu0 0.0
    %465 = vmatprep.subr.mxu0 0.0
    %466 = vmatpush1.xpose.msra.mxu0 0.0
    %467 = vmatprep.subr.mxu0 0.0
    %468 = vmatpush1.xpose.msra.mxu0 0.0
    %469 = vmatprep.subr.mxu0 0.0
    %470 = vmatpush1.xpose.msra.mxu0 0.0
    %471 = vmatprep.subr.mxu0 0.0
    %472 = vmatpush1.xpose.msra.mxu0 0.0
    %473 = vmatprep.subr.mxu0 0.0
    %474 = vmatpush1.xpose.msra.mxu0 0.0
    %475 = vmatprep.subr.mxu0 0.0
    %476 = vmatpush1.xpose.msra.mxu0 0.0
    %477 = vmatprep.subr.mxu0 0.0
    %478 = vmatpush1.xpose.msra.mxu0 0.0
    %479 = vmatprep.subr.mxu0 0.0
    %480 = vmatpush1.xpose.msra.mxu0 0.0
    %481 = vmatprep.subr.mxu0 0.0
    %482 = vmatpush1.xpose.msra.mxu0 0.0
    %483 = vmatprep.subr.mxu0 0.0
    %484 = vmatpush1.xpose.msra.mxu0 0.0
    %485 = vmatprep.subr.mxu0 0.0
    %486 = vmatpush1.xpose.msra.mxu0 0.0
    %487 = vmatprep.subr.mxu0 0.0
    %488 = vmatpush1.xpose.msra.mxu0 0.0
    %489 = vmatprep.subr.mxu0 0.0
    %490 = vmatpush1.xpose.msra.mxu0 0.0
    %491 = vmatprep.subr.mxu0 0.0
    %492 = vmatpush1.xpose.msra.mxu0 0.0
    %493 = vmatprep.subr.mxu0 0.0
    %494 = vmatpush1.xpose.msra.mxu0 0.0
    %495 = vmatprep.subr.mxu0 0.0
    %496 = vmatpush1.xpose.msra.mxu0 0.0
    %497 = vmatprep.subr.mxu0 0.0
    %498 = vmatpush1.xpose.msra.mxu0 0.0
    %499 = vmatprep.mubr.f32.mxu0 0.0
    %500 = vmatmul.mubr.f32.gmra.mrb[0].mxu0 %v338
    %v501 = vpop.f32.mrb[0].mxu0
    %v502 = vadd.f32 0.0, %v501
    %v503 = vpop.f32.mrb[0].mxu0
    %504 = vmatprep.mubr.f32.mxu0 0.0
    %505 = vmatmul.mubr.f32.gmra.mrb[0].mxu0 %v339
    %v506 = vpop.f32.mrb[0].mxu0
    %v507 = vadd.f32 0.0, %v506
    %v508 = vpop.f32.mrb[0].mxu0
    %509 = vdwg.mxu0
    %510 = vmatprep.subr.mxu0 0.0
    %511 = vmatpush1.xpose.msra.mxu0 %v348
    %512 = vmatprep.subr.mxu0 0.0
    %513 = vmatpush1.xpose.msra.mxu0 %v349
    %514 = vmatprep.subr.mxu0 0.0
    %515 = vmatpush1.xpose.msra.mxu0 0.0
    %516 = vmatprep.subr.mxu0 0.0
    %517 = vmatpush1.xpose.msra.mxu0 0.0
    %518 = vmatprep.subr.mxu0 0.0
    %519 = vmatpush1.xpose.msra.mxu0 0.0
    %520 = vmatprep.subr.mxu0 0.0
    %521 = vmatpush1.xpose.msra.mxu0 0.0
    %522 = vmatprep.subr.mxu0 0.0
    %523 = vmatpush1.xpose.msra.mxu0 0.0
    %524 = vmatprep.subr.mxu0 0.0
    %525 = vmatpush1.xpose.msra.mxu0 0.0
    %526 = vmatprep.subr.mxu0 0.0
    %527 = vmatpush1.xpose.msra.mxu0 0.0
    %528 = vmatprep.subr.mxu0 0.0
    %529 = vmatpush1.xpose.msra.mxu0 0.0
    %530 = vmatprep.subr.mxu0 0.0
    %531 = vmatpush1.xpose.msra.mxu0 0.0
    %532 = vmatprep.subr.mxu0 0.0
    %533 = vmatpush1.xpose.msra.mxu0 0.0
    %534 = vmatprep.subr.mxu0 0.0
    %535 = vmatpush1.xpose.msra.mxu0 0.0
    %536 = vmatprep.subr.mxu0 0.0
    %537 = vmatpush1.xpose.msra.mxu0 0.0
    %538 = vmatprep.subr.mxu0 0.0
    %539 = vmatpush1.xpose.msra.mxu0 0.0
    %540 = vmatprep.subr.mxu0 0.0
    %541 = vmatpush1.xpose.msra.mxu0 0.0
    %542 = vmatprep.subr.mxu0 0.0
    %543 = vmatpush1.xpose.msra.mxu0 0.0
    %544 = vmatprep.subr.mxu0 0.0
    %545 = vmatpush1.xpose.msra.mxu0 0.0
    %546 = vmatprep.subr.mxu0 0.0
    %547 = vmatpush1.xpose.msra.mxu0 0.0
    %548 = vmatprep.subr.mxu0 0.0
    %549 = vmatpush1.xpose.msra.mxu0 0.0
    %550 = vmatprep.subr.mxu0 0.0
    %551 = vmatpush1.xpose.msra.mxu0 0.0
    %552 = vmatprep.subr.mxu0 0.0
    %553 = vmatpush1.xpose.msra.mxu0 0.0
    %554 = vmatprep.subr.mxu0 0.0
    %555 = vmatpush1.xpose.msra.mxu0 0.0
    %556 = vmatprep.subr.mxu0 0.0
    %557 = vmatpush1.xpose.msra.mxu0 0.0
    %558 = vmatprep.subr.mxu0 0.0
    %559 = vmatpush1.xpose.msra.mxu0 0.0
    %560 = vmatprep.subr.mxu0 0.0
    %561 = vmatpush1.xpose.msra.mxu0 0.0
    %562 = vmatprep.subr.mxu0 0.0
    %563 = vmatpush1.xpose.msra.mxu0 0.0
    %564 = vmatprep.subr.mxu0 0.0
    %565 = vmatpush1.xpose.msra.mxu0 0.0
    %566 = vmatprep.subr.mxu0 0.0
    %567 = vmatpush1.xpose.msra.mxu0 0.0
    %568 = vmatprep.subr.mxu0 0.0
    %569 = vmatpush1.xpose.msra.mxu0 0.0
    %570 = vmatprep.subr.mxu0 0.0
    %571 = vmatpush1.xpose.msra.mxu0 0.0
    %572 = vmatprep.subr.mxu0 0.0
    %573 = vmatpush1.xpose.msra.mxu0 0.0
    %574 = vmatprep.mubr.f32.mxu0 0.0
    %575 = vmatmul.mubr.f32.gmra.mrb[0].mxu0 %v340
    %v576 = vpop.f32.mrb[0].mxu0
    %v577 = vadd.f32 0.0, %v576
    %v578 = vpop.f32.mrb[0].mxu0
    %579 = vmatprep.mubr.f32.mxu0 0.0
    %580 = vmatmul.mubr.f32.gmra.mrb[0].mxu0 %v341
    %v581 = vpop.f32.mrb[0].mxu0
    %v582 = vadd.f32 0.0, %v581
    %v583 = vpop.f32.mrb[0].mxu0
    %584 = vdwg.mxu0
    %585 = vmatprep.subr.mxu0 0.0
    %586 = vmatpush1.xpose.msra.mxu0 %v350
    %587 = vmatprep.subr.mxu0 0.0
    %588 = vmatpush1.xpose.msra.mxu0 %v351
    %589 = vmatprep.subr.mxu0 0.0
    %590 = vmatpush1.xpose.msra.mxu0 0.0
    %591 = vmatprep.subr.mxu0 0.0
    %592 = vmatpush1.xpose.msra.mxu0 0.0
    %593 = vmatprep.subr.mxu0 0.0
    %594 = vmatpush1.xpose.msra.mxu0 0.0
    %595 = vmatprep.subr.mxu0 0.0
    %596 = vmatpush1.xpose.msra.mxu0 0.0
    %597 = vmatprep.subr.mxu0 0.0
    %598 = vmatpush1.xpose.msra.mxu0 0.0
    %599 = vmatprep.subr.mxu0 0.0
    %600 = vmatpush1.xpose.msra.mxu0 0.0
    %601 = vmatprep.subr.mxu0 0.0
    %602 = vmatpush1.xpose.msra.mxu0 0.0
    %603 = vmatprep.subr.mxu0 0.0
    %604 = vmatpush1.xpose.msra.mxu0 0.0
    %605 = vmatprep.subr.mxu0 0.0
    %606 = vmatpush1.xpose.msra.mxu0 0.0
    %607 = vmatprep.subr.mxu0 0.0
    %608 = vmatpush1.xpose.msra.mxu0 0.0
    %609 = vmatprep.subr.mxu0 0.0
    %610 = vmatpush1.xpose.msra.mxu0 0.0
    %611 = vmatprep.subr.mxu0 0.0
    %612 = vmatpush1.xpose.msra.mxu0 0.0
    %613 = vmatprep.subr.mxu0 0.0
    %614 = vmatpush1.xpose.msra.mxu0 0.0
    %615 = vmatprep.subr.mxu0 0.0
    %616 = vmatpush1.xpose.msra.mxu0 0.0
    %617 = vmatprep.subr.mxu0 0.0
    %618 = vmatpush1.xpose.msra.mxu0 0.0
    %619 = vmatprep.subr.mxu0 0.0
    %620 = vmatpush1.xpose.msra.mxu0 0.0
    %621 = vmatprep.subr.mxu0 0.0
    %622 = vmatpush1.xpose.msra.mxu0 0.0
    %623 = vmatprep.subr.mxu0 0.0
    %624 = vmatpush1.xpose.msra.mxu0 0.0
    %625 = vmatprep.subr.mxu0 0.0
    %626 = vmatpush1.xpose.msra.mxu0 0.0
    %627 = vmatprep.subr.mxu0 0.0
    %628 = vmatpush1.xpose.msra.mxu0 0.0
    %629 = vmatprep.subr.mxu0 0.0
    %630 = vmatpush1.xpose.msra.mxu0 0.0
    %631 = vmatprep.subr.mxu0 0.0
    %632 = vmatpush1.xpose.msra.mxu0 0.0
    %633 = vmatprep.subr.mxu0 0.0
    %634 = vmatpush1.xpose.msra.mxu0 0.0
    %635 = vmatprep.subr.mxu0 0.0
    %636 = vmatpush1.xpose.msra.mxu0 0.0
    %637 = vmatprep.subr.mxu0 0.0
    %638 = vmatpush1.xpose.msra.mxu0 0.0
    %639 = vmatprep.subr.mxu0 0.0
    %640 = vmatpush1.xpose.msra.mxu0 0.0
    %641 = vmatprep.subr.mxu0 0.0
    %642 = vmatpush1.xpose.msra.mxu0 0.0
    %643 = vmatprep.subr.mxu0 0.0
    %644 = vmatpush1.xpose.msra.mxu0 0.0
    %645 = vmatprep.subr.mxu0 0.0
    %646 = vmatpush1.xpose.msra.mxu0 0.0
    %647 = vmatprep.subr.mxu0 0.0
    %648 = vmatpush1.xpose.msra.mxu0 0.0
    %649 = vmatprep.mubr.f32.mxu0 0.0
    %650 = vmatmul.mubr.f32.gmra.mrb[0].mxu0 %v342
    %v651 = vpop.f32.mrb[0].mxu0
    %v652 = vadd.f32 0.0, %v651
    %v653 = vpop.f32.mrb[0].mxu0
    %654 = vmatprep.mubr.f32.mxu0 0.0
    %655 = vmatmul.mubr.f32.gmra.mrb[0].mxu0 %v343
    %v656 = vpop.f32.mrb[0].mxu0
    %v657 = vadd.f32 0.0, %v656
    %v658 = vpop.f32.mrb[0].mxu0
    %659 = vdwg.mxu0
    %vm660 = vcmask 130048
    %v661 = vsel %vm660, %v427, -inf
    %662 = vmax.xlane.f32.xlu0 %v661
    %v663 = vpop.xlane.xlu0 %662
    %v664 = vsel %vm660, %v432, -inf
    %665 = vmax.xlane.f32.xlu0 %v664
    %v666 = vpop.xlane.xlu0 %665
    %v667 = vsel %vm660, %v502, -inf
    %668 = vmax.xlane.f32.xlu0 %v667
    %v669 = vpop.xlane.xlu0 %668
    %v670 = vsel %vm660, %v507, -inf
    %671 = vmax.xlane.f32.xlu0 %v670
    %v672 = vpop.xlane.xlu0 %671
    %v673 = vsel %vm660, %v577, -inf
    %674 = vmax.xlane.f32.xlu0 %v673
    %v675 = vpop.xlane.xlu0 %674
    %v676 = vsel %vm660, %v582, -inf
    %677 = vmax.xlane.f32.xlu0 %v676
    %v678 = vpop.xlane.xlu0 %677
    %v679 = vsel %vm660, %v652, -inf
    %680 = vmax.xlane.f32.xlu0 %v679
    %v681 = vpop.xlane.xlu0 %680
    %v682 = vsel %vm660, %v657, -inf
    %683 = vmax.xlane.f32.xlu0 %v682
    %v684 = vpop.xlane.xlu0 %683
    %v685 = vsub.f32 %v427, %v663
    %v686 = vsub.f32 %v432, %v666
    %v687 = vsub.f32 %v502, %v669
    %v688 = vsub.f32 %v507, %v672
    %v689 = vsub.f32 %v577, %v675
    %v690 = vsub.f32 %v582, %v678
    %v691 = vsub.f32 %v652, %v681
    %v692 = vsub.f32 %v657, %v684
    %v693 = vmul.f32 %v685, 1.442695
    %v694 = vpow.pop %v693
    %v695 = vmul.f32 %v686, 1.442695
    %v696 = vpow.pop %v695
    %v697 = vmul.f32 %v687, 1.442695
    %v698 = vpow.pop %v697
    %v699 = vmul.f32 %v688, 1.442695
    %v700 = vpow.pop %v699
    %v701 = vmul.f32 %v689, 1.442695
    %v702 = vpow.pop %v701
    %v703 = vmul.f32 %v690, 1.442695
    %v704 = vpow.pop %v703
    %v705 = vmul.f32 %v691, 1.442695
    %v706 = vpow.pop %v705
    %v707 = vmul.f32 %v692, 1.442695
    %v708 = vpow.pop %v707
    %v709 = vsel %vm660, %v694, 0.0
    %710 = vadd.xlane.f32.xlu0 %v709
    %v711 = vpop.xlane.xlu0 %710
    %v712 = vsel %vm660, %v696, 0.0
    %713 = vadd.xlane.f32.xlu0 %v712
    %v714 = vpop.xlane.xlu0 %713
    %v715 = vsel %vm660, %v698, 0.0
    %716 = vadd.xlane.f32.xlu0 %v715
    %v717 = vpop.xlane.xlu0 %716
    %v718 = vsel %vm660, %v700, 0.0
    %719 = vadd.xlane.f32.xlu0 %v718
    %v720 = vpop.xlane.xlu0 %719
    %v721 = vsel %vm660, %v702, 0.0
    %722 = vadd.xlane.f32.xlu0 %v721
    %v723 = vpop.xlane.xlu0 %722
    %v724 = vsel %vm660, %v704, 0.0
    %725 = vadd.xlane.f32.xlu0 %v724
    %v726 = vpop.xlane.xlu0 %725
    %v727 = vsel %vm660, %v706, 0.0
    %728 = vadd.xlane.f32.xlu0 %v727
    %v729 = vpop.xlane.xlu0 %728
    %v730 = vsel %vm660, %v708, 0.0
    %731 = vadd.xlane.f32.xlu0 %v730
    %v732 = vpop.xlane.xlu0 %731
    %v733 = vrcp.pop %v711
    %v734 = vrcp.pop %v714
    %v735 = vrcp.pop %v717
    %v736 = vrcp.pop %v720
    %v737 = vrcp.pop %v723
    %v738 = vrcp.pop %v726
    %v739 = vrcp.pop %v729
    %v740 = vrcp.pop %v732
    %v741 = vmul.f32 %v694, %v733
    %v742 = vmul.f32 %v696, %v734
    %v743 = vmul.f32 %v698, %v735
    %v744 = vmul.f32 %v700, %v736
    %v745 = vmul.f32 %v702, %v737
    %v746 = vmul.f32 %v704, %v738
    %v747 = vmul.f32 %v706, %v739
    %v748 = vmul.f32 %v708, %v740
    %v750 = vsel %vm660, %v741, 0
    %v753 = vsel %vm660, %v742, 0
    %755 = vmatprep.subr.mxu0 0.0
    %756 = vmatpush1.msra.mxu0 %v352
    %757 = vmatprep.subr.mxu0 0.0
    %758 = vmatpush1.msra.mxu0 %v353
    %759 = vmatprep.subr.mxu0 0.0
    %760 = vmatpush1.msra.mxu0 0.0
    %761 = vmatprep.subr.mxu0 0.0
    %762 = vmatpush1.msra.mxu0 0.0
    %763 = vmatprep.subr.mxu0 0.0
    %764 = vmatpush1.msra.mxu0 0.0
    %765 = vmatprep.subr.mxu0 0.0
    %766 = vmatpush1.msra.mxu0 0.0
    %767 = vmatprep.subr.mxu0 0.0
    %768 = vmatpush1.msra.mxu0 0.0
    %769 = vmatprep.subr.mxu0 0.0
    %770 = vmatpush1.msra.mxu0 0.0
    %771 = vmatprep.subr.mxu0 0.0
    %772 = vmatpush1.msra.mxu0 0.0
    %773 = vmatprep.subr.mxu0 0.0
    %774 = vmatpush1.msra.mxu0 0.0
    %775 = vmatprep.subr.mxu0 0.0
    %776 = vmatpush1.msra.mxu0 0.0
    %777 = vmatprep.subr.mxu0 0.0
    %778 = vmatpush1.msra.mxu0 0.0
    %779 = vmatprep.subr.mxu0 0.0
    %780 = vmatpush1.msra.mxu0 0.0
    %781 = vmatprep.subr.mxu0 0.0
    %782 = vmatpush1.msra.mxu0 0.0
    %783 = vmatprep.subr.mxu0 0.0
    %784 = vmatpush1.msra.mxu0 0.0
    %785 = vmatprep.subr.mxu0 0.0
    %786 = vmatpush1.msra.mxu0 0.0
    %787 = vmatprep.subr.mxu0 0.0
    %788 = vmatpush1.msra.mxu0 0.0
    %789 = vmatprep.subr.mxu0 0.0
    %790 = vmatpush1.msra.mxu0 0.0
    %791 = vmatprep.subr.mxu0 0.0
    %792 = vmatpush1.msra.mxu0 0.0
    %793 = vmatprep.subr.mxu0 0.0
    %794 = vmatpush1.msra.mxu0 0.0
    %795 = vmatprep.subr.mxu0 0.0
    %796 = vmatpush1.msra.mxu0 0.0
    %797 = vmatprep.subr.mxu0 0.0
    %798 = vmatpush1.msra.mxu0 0.0
    %799 = vmatprep.subr.mxu0 0.0
    %800 = vmatpush1.msra.mxu0 0.0
    %801 = vmatprep.subr.mxu0 0.0
    %802 = vmatpush1.msra.mxu0 0.0
    %803 = vmatprep.subr.mxu0 0.0
    %804 = vmatpush1.msra.mxu0 0.0
    %805 = vmatprep.subr.mxu0 0.0
    %806 = vmatpush1.msra.mxu0 0.0
    %807 = vmatprep.subr.mxu0 0.0
    %808 = vmatpush1.msra.mxu0 0.0
    %809 = vmatprep.subr.mxu0 0.0
    %810 = vmatpush1.msra.mxu0 0.0
    %811 = vmatprep.subr.mxu0 0.0
    %812 = vmatpush1.msra.mxu0 0.0
    %813 = vmatprep.subr.mxu0 0.0
    %814 = vmatpush1.msra.mxu0 0.0
    %815 = vmatprep.subr.mxu0 0.0
    %816 = vmatpush1.msra.mxu0 0.0
    %817 = vmatprep.subr.mxu0 0.0
    %818 = vmatpush1.msra.mxu0 0.0
    %819 = vmatprep.mubr.f32.mxu0 0.0
    %820 = vmatmul.mubr.f32.gmra.mrb[0].mxu0 %v750
    %v821 = vpop.f32.mrb[0].mxu0
    %v822 = vadd.f32 0.0, %v821
    %v823 = vpop.f32.mrb[0].mxu0
    %824 = vmatprep.mubr.f32.mxu0 0.0
    %825 = vmatmul.mubr.f32.gmra.mrb[0].mxu0 %v753
    %v826 = vpop.f32.mrb[0].mxu0
    %v827 = vadd.f32 0.0, %v826
    %v828 = vpop.f32.mrb[0].mxu0
    %829 = vdwg.mxu0
    %v831 = vsel %vm660, %v743, 0
    %v834 = vsel %vm660, %v744, 0
    %836 = vmatprep.subr.mxu0 0.0
    %837 = vmatpush1.msra.mxu0 %v354
    %838 = vmatprep.subr.mxu0 0.0
    %839 = vmatpush1.msra.mxu0 %v355
    %840 = vmatprep.subr.mxu0 0.0
    %841 = vmatpush1.msra.mxu0 0.0
    %842 = vmatprep.subr.mxu0 0.0
    %843 = vmatpush1.msra.mxu0 0.0
    %844 = vmatprep.subr.mxu0 0.0
    %845 = vmatpush1.msra.mxu0 0.0
    %846 = vmatprep.subr.mxu0 0.0
    %847 = vmatpush1.msra.mxu0 0.0
    %848 = vmatprep.subr.mxu0 0.0
    %849 = vmatpush1.msra.mxu0 0.0
    %850 = vmatprep.subr.mxu0 0.0
    %851 = vmatpush1.msra.mxu0 0.0
    %852 = vmatprep.subr.mxu0 0.0
    %853 = vmatpush1.msra.mxu0 0.0
    %854 = vmatprep.subr.mxu0 0.0
    %855 = vmatpush1.msra.mxu0 0.0
    %856 = vmatprep.subr.mxu0 0.0
    %857 = vmatpush1.msra.mxu0 0.0
    %858 = vmatprep.subr.mxu0 0.0
    %859 = vmatpush1.msra.mxu0 0.0
    %860 = vmatprep.subr.mxu0 0.0
    %861 = vmatpush1.msra.mxu0 0.0
    %862 = vmatprep.subr.mxu0 0.0
    %863 = vmatpush1.msra.mxu0 0.0
    %864 = vmatprep.subr.mxu0 0.0
    %865 = vmatpush1.msra.mxu0 0.0
    %866 = vmatprep.subr.mxu0 0.0
    %867 = vmatpush1.msra.mxu0 0.0
    %868 = vmatprep.subr.mxu0 0.0
    %869 = vmatpush1.msra.mxu0 0.0
    %870 = vmatprep.subr.mxu0 0.0
    %871 = vmatpush1.msra.mxu0 0.0
    %872 = vmatprep.subr.mxu0 0.0
    %873 = vmatpush1.msra.mxu0 0.0
    %874 = vmatprep.subr.mxu0 0.0
    %875 = vmatpush1.msra.mxu0 0.0
    %876 = vmatprep.subr.mxu0 0.0
    %877 = vmatpush1.msra.mxu0 0.0
    %878 = vmatprep.subr.mxu0 0.0
    %879 = vmatpush1.msra.mxu0 0.0
    %880 = vmatprep.subr.mxu0 0.0
    %881 = vmatpush1.msra.mxu0 0.0
    %882 = vmatprep.subr.mxu0 0.0
    %883 = vmatpush1.msra.mxu0 0.0
    %884 = vmatprep.subr.mxu0 0.0
    %885 = vmatpush1.msra.mxu0 0.0
    %886 = vmatprep.subr.mxu0 0.0
    %887 = vmatpush1.msra.mxu0 0.0
    %888 = vmatprep.subr.mxu0 0.0
    %889 = vmatpush1.msra.mxu0 0.0
    %890 = vmatprep.subr.mxu0 0.0
    %891 = vmatpush1.msra.mxu0 0.0
    %892 = vmatprep.subr.mxu0 0.0
    %893 = vmatpush1.msra.mxu0 0.0
    %894 = vmatprep.subr.mxu0 0.0
    %895 = vmatpush1.msra.mxu0 0.0
    %896 = vmatprep.subr.mxu0 0.0
    %897 = vmatpush1.msra.mxu0 0.0
    %898 = vmatprep.subr.mxu0 0.0
    %899 = vmatpush1.msra.mxu0 0.0
    %900 = vmatprep.mubr.f32.mxu0 0.0
    %901 = vmatmul.mubr.f32.gmra.mrb[0].mxu0 %v831
    %v902 = vpop.f32.mrb[0].mxu0
    %v903 = vadd.f32 0.0, %v902
    %v904 = vpop.f32.mrb[0].mxu0
    %905 = vmatprep.mubr.f32.mxu0 0.0
    %906 = vmatmul.mubr.f32.gmra.mrb[0].mxu0 %v834
    %v907 = vpop.f32.mrb[0].mxu0
    %v908 = vadd.f32 0.0, %v907
    %v909 = vpop.f32.mrb[0].mxu0
    %910 = vdwg.mxu0
    %v912 = vsel %vm660, %v745, 0
    %v915 = vsel %vm660, %v746, 0
    %917 = vmatprep.subr.mxu0 0.0
    %918 = vmatpush1.msra.mxu0 %v356
    %919 = vmatprep.subr.mxu0 0.0
    %920 = vmatpush1.msra.mxu0 %v357
    %921 = vmatprep.subr.mxu0 0.0
    %922 = vmatpush1.msra.mxu0 0.0
    %923 = vmatprep.subr.mxu0 0.0
    %924 = vmatpush1.msra.mxu0 0.0
    %925 = vmatprep.subr.mxu0 0.0
    %926 = vmatpush1.msra.mxu0 0.0
    %927 = vmatprep.subr.mxu0 0.0
    %928 = vmatpush1.msra.mxu0 0.0
    %929 = vmatprep.subr.mxu0 0.0
    %930 = vmatpush1.msra.mxu0 0.0
    %931 = vmatprep.subr.mxu0 0.0
    %932 = vmatpush1.msra.mxu0 0.0
    %933 = vmatprep.subr.mxu0 0.0
    %934 = vmatpush1.msra.mxu0 0.0
    %935 = vmatprep.subr.mxu0 0.0
    %936 = vmatpush1.msra.mxu0 0.0
    %937 = vmatprep.subr.mxu0 0.0
    %938 = vmatpush1.msra.mxu0 0.0
    %939 = vmatprep.subr.mxu0 0.0
    %940 = vmatpush1.msra.mxu0 0.0
    %941 = vmatprep.subr.mxu0 0.0
    %942 = vmatpush1.msra.mxu0 0.0
    %943 = vmatprep.subr.mxu0 0.0
    %944 = vmatpush1.msra.mxu0 0.0
    %945 = vmatprep.subr.mxu0 0.0
    %946 = vmatpush1.msra.mxu0 0.0
    %947 = vmatprep.subr.mxu0 0.0
    %948 = vmatpush1.msra.mxu0 0.0
    %949 = vmatprep.subr.mxu0 0.0
    %950 = vmatpush1.msra.mxu0 0.0
    %951 = vmatprep.subr.mxu0 0.0
    %952 = vmatpush1.msra.mxu0 0.0
    %953 = vmatprep.subr.mxu0 0.0
    %954 = vmatpush1.msra.mxu0 0.0
    %955 = vmatprep.subr.mxu0 0.0
    %956 = vmatpush1.msra.mxu0 0.0
    %957 = vmatprep.subr.mxu0 0.0
    %958 = vmatpush1.msra.mxu0 0.0
    %959 = vmatprep.subr.mxu0 0.0
    %960 = vmatpush1.msra.mxu0 0.0
    %961 = vmatprep.subr.mxu0 0.0
    %962 = vmatpush1.msra.mxu0 0.0
    %963 = vmatprep.subr.mxu0 0.0
    %964 = vmatpush1.msra.mxu0 0.0
    %965 = vmatprep.subr.mxu0 0.0
    %966 = vmatpush1.msra.mxu0 0.0
    %967 = vmatprep.subr.mxu0 0.0
    %968 = vmatpush1.msra.mxu0 0.0
    %969 = vmatprep.subr.mxu0 0.0
    %970 = vmatpush1.msra.mxu0 0.0
    %971 = vmatprep.subr.mxu0 0.0
    %972 = vmatpush1.msra.mxu0 0.0
    %973 = vmatprep.subr.mxu0 0.0
    %974 = vmatpush1.msra.mxu0 0.0
    %975 = vmatprep.subr.mxu0 0.0
    %976 = vmatpush1.msra.mxu0 0.0
    %977 = vmatprep.subr.mxu0 0.0
    %978 = vmatpush1.msra.mxu0 0.0
    %979 = vmatprep.subr.mxu0 0.0
    %980 = vmatpush1.msra.mxu0 0.0
    %981 = vmatprep.mubr.f32.mxu0 0.0
    %982 = vmatmul.mubr.f32.gmra.mrb[0].mxu0 %v912
    %v983 = vpop.f32.mrb[0].mxu0
    %v984 = vadd.f32 0.0, %v983
    %v985 = vpop.f32.mrb[0].mxu0
    %986 = vmatprep.mubr.f32.mxu0 0.0
    %987 = vmatmul.mubr.f32.gmra.mrb[0].mxu0 %v915
    %v988 = vpop.f32.mrb[0].mxu0
    %v989 = vadd.f32 0.0, %v988
    %v990 = vpop.f32.mrb[0].mxu0
    %991 = vdwg.mxu0
    %v993 = vsel %vm660, %v747, 0
    %v996 = vsel %vm660, %v748, 0
    %998 = vmatprep.subr.mxu0 0.0
    %999 = vmatpush1.msra.mxu0 %v358
    %1000 = vmatprep.subr.mxu0 0.0
    %1001 = vmatpush1.msra.mxu0 %v359
    %1002 = vmatprep.subr.mxu0 0.0
    %1003 = vmatpush1.msra.mxu0 0.0
    %1004 = vmatprep.subr.mxu0 0.0
    %1005 = vmatpush1.msra.mxu0 0.0
    %1006 = vmatprep.subr.mxu0 0.0
    %1007 = vmatpush1.msra.mxu0 0.0
    %1008 = vmatprep.subr.mxu0 0.0
    %1009 = vmatpush1.msra.mxu0 0.0
    %1010 = vmatprep.subr.mxu0 0.0
    %1011 = vmatpush1.msra.mxu0 0.0
    %1012 = vmatprep.subr.mxu0 0.0
    %1013 = vmatpush1.msra.mxu0 0.0
    %1014 = vmatprep.subr.mxu0 0.0
    %1015 = vmatpush1.msra.mxu0 0.0
    %1016 = vmatprep.subr.mxu0 0.0
    %1017 = vmatpush1.msra.mxu0 0.0
    %1018 = vmatprep.subr.mxu0 0.0
    %1019 = vmatpush1.msra.mxu0 0.0
    %1020 = vmatprep.subr.mxu0 0.0
    %1021 = vmatpush1.msra.mxu0 0.0
    %1022 = vmatprep.subr.mxu0 0.0
    %1023 = vmatpush1.msra.mxu0 0.0
    %1024 = vmatprep.subr.mxu0 0.0
    %1025 = vmatpush1.msra.mxu0 0.0
    %1026 = vmatprep.subr.mxu0 0.0
    %1027 = vmatpush1.msra.mxu0 0.0
    %1028 = vmatprep.subr.mxu0 0.0
    %1029 = vmatpush1.msra.mxu0 0.0
    %1030 = vmatprep.subr.mxu0 0.0
    %1031 = vmatpush1.msra.mxu0 0.0
    %1032 = vmatprep.subr.mxu0 0.0
    %1033 = vmatpush1.msra.mxu0 0.0
    %1034 = vmatprep.subr.mxu0 0.0
    %1035 = vmatpush1.msra.mxu0 0.0
    %1036 = vmatprep.subr.mxu0 0.0
    %1037 = vmatpush1.msra.mxu0 0.0
    %1038 = vmatprep.subr.mxu0 0.0
    %1039 = vmatpush1.msra.mxu0 0.0
    %1040 = vmatprep.subr.mxu0 0.0
    %1041 = vmatpush1.msra.mxu0 0.0
    %1042 = vmatprep.subr.mxu0 0.0
    %1043 = vmatpush1.msra.mxu0 0.0
    %1044 = vmatprep.subr.mxu0 0.0
    %1045 = vmatpush1.msra.mxu0 0.0
    %1046 = vmatprep.subr.mxu0 0.0
    %1047 = vmatpush1.msra.mxu0 0.0
    %1048 = vmatprep.subr.mxu0 0.0
    %1049 = vmatpush1.msra.mxu0 0.0
    %1050 = vmatprep.subr.mxu0 0.0
    %1051 = vmatpush1.msra.mxu0 0.0
    %1052 = vmatprep.subr.mxu0 0.0
    %1053 = vmatpush1.msra.mxu0 0.0
    %1054 = vmatprep.subr.mxu0 0.0
    %1055 = vmatpush1.msra.mxu0 0.0
    %1056 = vmatprep.subr.mxu0 0.0
    %1057 = vmatpush1.msra.mxu0 0.0
    %1058 = vmatprep.subr.mxu0 0.0
    %1059 = vmatpush1.msra.mxu0 0.0
    %1060 = vmatprep.subr.mxu0 0.0
    %1061 = vmatpush1.msra.mxu0 0.0
    %1062 = vmatprep.mubr.f32.mxu0 0.0
    %1063 = vmatmul.mubr.f32.gmra.mrb[0].mxu0 %v993
    %v1064 = vpop.f32.mrb[0].mxu0
    %v1065 = vadd.f32 0.0, %v1064
    %v1066 = vpop.f32.mrb[0].mxu0
    %1067 = vmatprep.mubr.f32.mxu0 0.0
    %1068 = vmatmul.mubr.f32.gmra.mrb[0].mxu0 %v996
    %v1069 = vpop.f32.mrb[0].mxu0
    %v1070 = vadd.f32 0.0, %v1069
    %v1071 = vpop.f32.mrb[0].mxu0
    %1072 = vdwg.mxu0
    %vm1073 = vcmask 261120
    %1074 = vst.msk [vmem:[#allocation10] sm:$0xff] %vm1073, %v822
    %1075 = vst.msk [vmem:[#allocation10 + $0x8] sm:$0xff] %vm1073, %v827
    %1076 = vst.msk [vmem:[#allocation10 + $0x10] sm:$0xff] %vm1073, %v903
    %1077 = vst.msk [vmem:[#allocation10 + $0x18] sm:$0xff] %vm1073, %v908
    %1078 = vst.msk [vmem:[#allocation10 + $0x20] sm:$0xff] %vm1073, %v984
    %1079 = vst.msk [vmem:[#allocation10 + $0x28] sm:$0xff] %vm1073, %v989
    %1080 = vst.msk [vmem:[#allocation10 + $0x30] sm:$0xff] %vm1073, %v1065
    %1081 = vst.msk [vmem:[#allocation10 + $0x38] sm:$0xff] %vm1073, %v1070
    %v1082 = vcombine.high %v741, 0.0
    %v1084 = vunpack.c.l.s4 1983009808
    %v1085 = vunpack.c.0.s8 %v1084
    %v1086 = vlaneseq
    %v1087 = vshrl.u32 %v1086, 7
    %v1088 = vsub.s32 %v1085, %v1087
    %v1089 = vrot.slane %v741, %v1088
    %v1091 = vunpack.c.l.s4 1983009808
    %v1092 = vunpack.c.0.s8 %v1091
    %v1093 = vlaneseq
    %v1094 = vshrl.u32 %v1093, 7
    %v1095 = vsub.s32 %v1092, %v1094
    %v1096 = vrot.slane %v1082, %v1095
    %v1097 = vcombine.high %v1089, 0.0
    %v1099 = vunpack.c.l.s4 1934713408
    %v1100 = vunpack.c.0.s8 %v1099
    %v1101 = vlaneseq
    %v1102 = vshrl.u32 %v1101, 7
    %v1103 = vsub.s32 %v1100, %v1102
    %v1104 = vrot.slane %v1089, %v1103
    %v1106 = vunpack.c.l.s4 1934713408
    %v1107 = vunpack.c.0.s8 %v1106
    %v1108 = vlaneseq
    %v1109 = vshrl.u32 %v1108, 7
    %v1110 = vsub.s32 %v1107, %v1109
    %v1111 = vrot.slane %v1097, %v1110
    %v1112 = vcombine.high %v1096, 0.0
    %v1114 = vunpack.c.l.s4 1934713408
    %v1115 = vunpack.c.0.s8 %v1114
    %v1116 = vlaneseq
    %v1117 = vshrl.u32 %v1116, 7
    %v1118 = vsub.s32 %v1115, %v1117
    %v1119 = vrot.slane %v1096, %v1118
    %v1121 = vunpack.c.l.s4 1934713408
    %v1122 = vunpack.c.0.s8 %v1121
    %v1123 = vlaneseq
    %v1124 = vshrl.u32 %v1123, 7
    %v1125 = vsub.s32 %v1122, %v1124
    %v1126 = vrot.slane %v1112, %v1125
    %v1127 = vcombine.high %v1104, 0.0
    %v1128 = vcombine.high %v1111, 0.0
    %v1129 = vcombine.high %v1119, 0.0
    %v1130 = vcombine.high %v1126, 0.0
    %v1131 = vcombine.high %v742, 0.0
    %v1133 = vunpack.c.l.s4 1983009808
    %v1134 = vunpack.c.0.s8 %v1133
    %v1135 = vlaneseq
    %v1136 = vshrl.u32 %v1135, 7
    %v1137 = vsub.s32 %v1134, %v1136
    %v1138 = vrot.slane %v742, %v1137
    %v1140 = vunpack.c.l.s4 1983009808
    %v1141 = vunpack.c.0.s8 %v1140
    %v1142 = vlaneseq
    %v1143 = vshrl.u32 %v1142, 7
    %v1144 = vsub.s32 %v1141, %v1143
    %v1145 = vrot.slane %v1131, %v1144
    %v1146 = vcombine.high %v1138, 0.0
    %v1148 = vunpack.c.l.s4 1934713408
    %v1149 = vunpack.c.0.s8 %v1148
    %v1150 = vlaneseq
    %v1151 = vshrl.u32 %v1150, 7
    %v1152 = vsub.s32 %v1149, %v1151
    %v1153 = vrot.slane %v1138, %v1152
    %v1155 = vunpack.c.l.s4 1934713408
    %v1156 = vunpack.c.0.s8 %v1155
    %v1157 = vlaneseq
    %v1158 = vshrl.u32 %v1157, 7
    %v1159 = vsub.s32 %v1156, %v1158
    %v1160 = vrot.slane %v1146, %v1159
    %v1161 = vcombine.high %v1145, 0.0
    %v1163 = vunpack.c.l.s4 1934713408
    %v1164 = vunpack.c.0.s8 %v1163
    %v1165 = vlaneseq
    %v1166 = vshrl.u32 %v1165, 7
    %v1167 = vsub.s32 %v1164, %v1166
    %v1168 = vrot.slane %v1145, %v1167
    %v1170 = vunpack.c.l.s4 1934713408
    %v1171 = vunpack.c.0.s8 %v1170
    %v1172 = vlaneseq
    %v1173 = vshrl.u32 %v1172, 7
    %v1174 = vsub.s32 %v1171, %v1173
    %v1175 = vrot.slane %v1161, %v1174
    %v1176 = vcombine.high %v1153, 0.0
    %v1177 = vcombine.high %v1160, 0.0
    %v1178 = vcombine.high %v1168, 0.0
    %v1179 = vcombine.high %v1175, 0.0
    %v1180 = vcombine.high %v743, 0.0
    %v1182 = vunpack.c.l.s4 1983009808
    %v1183 = vunpack.c.0.s8 %v1182
    %v1184 = vlaneseq
    %v1185 = vshrl.u32 %v1184, 7
    %v1186 = vsub.s32 %v1183, %v1185
    %v1187 = vrot.slane %v743, %v1186
    %v1189 = vunpack.c.l.s4 1983009808
    %v1190 = vunpack.c.0.s8 %v1189
    %v1191 = vlaneseq
    %v1192 = vshrl.u32 %v1191, 7
    %v1193 = vsub.s32 %v1190, %v1192
    %v1194 = vrot.slane %v1180, %v1193
    %v1195 = vcombine.high %v1187, 0.0
    %v1197 = vunpack.c.l.s4 1934713408
    %v1198 = vunpack.c.0.s8 %v1197
    %v1199 = vlaneseq
    %v1200 = vshrl.u32 %v1199, 7
    %v1201 = vsub.s32 %v1198, %v1200
    %v1202 = vrot.slane %v1187, %v1201
    %v1204 = vunpack.c.l.s4 1934713408
    %v1205 = vunpack.c.0.s8 %v1204
    %v1206 = vlaneseq
    %v1207 = vshrl.u32 %v1206, 7
    %v1208 = vsub.s32 %v1205, %v1207
    %v1209 = vrot.slane %v1195, %v1208
    %v1210 = vcombine.high %v1194, 0.0
    %v1212 = vunpack.c.l.s4 1934713408
    %v1213 = vunpack.c.0.s8 %v1212
    %v1214 = vlaneseq
    %v1215 = vshrl.u32 %v1214, 7
    %v1216 = vsub.s32 %v1213, %v1215
    %v1217 = vrot.slane %v1194, %v1216
    %v1219 = vunpack.c.l.s4 1934713408
    %v1220 = vunpack.c.0.s8 %v1219
    %v1221 = vlaneseq
    %v1222 = vshrl.u32 %v1221, 7
    %v1223 = vsub.s32 %v1220, %v1222
    %v1224 = vrot.slane %v1210, %v1223
    %v1225 = vcombine.high %v1202, 0.0
    %v1226 = vcombine.high %v1209, 0.0
    %v1227 = vcombine.high %v1217, 0.0
    %v1228 = vcombine.high %v1224, 0.0
    %v1229 = vcombine.high %v744, 0.0
    %v1231 = vunpack.c.l.s4 1983009808
    %v1232 = vunpack.c.0.s8 %v1231
    %v1233 = vlaneseq
    %v1234 = vshrl.u32 %v1233, 7
    %v1235 = vsub.s32 %v1232, %v1234
    %v1236 = vrot.slane %v744, %v1235
    %v1238 = vunpack.c.l.s4 1983009808
    %v1239 = vunpack.c.0.s8 %v1238
    %v1240 = vlaneseq
    %v1241 = vshrl.u32 %v1240, 7
    %v1242 = vsub.s32 %v1239, %v1241
    %v1243 = vrot.slane %v1229, %v1242
    %v1244 = vcombine.high %v1236, 0.0
    %v1246 = vunpack.c.l.s4 1934713408
    %v1247 = vunpack.c.0.s8 %v1246
    %v1248 = vlaneseq
    %v1249 = vshrl.u32 %v1248, 7
    %v1250 = vsub.s32 %v1247, %v1249
    %v1251 = vrot.slane %v1236, %v1250
    %v1253 = vunpack.c.l.s4 1934713408
    %v1254 = vunpack.c.0.s8 %v1253
    %v1255 = vlaneseq
    %v1256 = vshrl.u32 %v1255, 7
    %v1257 = vsub.s32 %v1254, %v1256
    %v1258 = vrot.slane %v1244, %v1257
    %v1259 = vcombine.high %v1243, 0.0
    %v1261 = vunpack.c.l.s4 1934713408
    %v1262 = vunpack.c.0.s8 %v1261
    %v1263 = vlaneseq
    %v1264 = vshrl.u32 %v1263, 7
    %v1265 = vsub.s32 %v1262, %v1264
    %v1266 = vrot.slane %v1243, %v1265
    %v1268 = vunpack.c.l.s4 1934713408
    %v1269 = vunpack.c.0.s8 %v1268
    %v1270 = vlaneseq
    %v1271 = vshrl.u32 %v1270, 7
    %v1272 = vsub.s32 %v1269, %v1271
    %v1273 = vrot.slane %v1259, %v1272
    %v1274 = vcombine.high %v1251, 0.0
    %v1275 = vcombine.high %v1258, 0.0
    %v1276 = vcombine.high %v1266, 0.0
    %v1277 = vcombine.high %v1273, 0.0
    %v1278 = vcombine.high %v745, 0.0
    %v1280 = vunpack.c.l.s4 1983009808
    %v1281 = vunpack.c.0.s8 %v1280
    %v1282 = vlaneseq
    %v1283 = vshrl.u32 %v1282, 7
    %v1284 = vsub.s32 %v1281, %v1283
    %v1285 = vrot.slane %v745, %v1284
    %v1287 = vunpack.c.l.s4 1983009808
    %v1288 = vunpack.c.0.s8 %v1287
    %v1289 = vlaneseq
    %v1290 = vshrl.u32 %v1289, 7
    %v1291 = vsub.s32 %v1288, %v1290
    %v1292 = vrot.slane %v1278, %v1291
    %v1293 = vcombine.high %v1285, 0.0
    %v1295 = vunpack.c.l.s4 1934713408
    %v1296 = vunpack.c.0.s8 %v1295
    %v1297 = vlaneseq
    %v1298 = vshrl.u32 %v1297, 7
    %v1299 = vsub.s32 %v1296, %v1298
    %v1300 = vrot.slane %v1285, %v1299
    %v1302 = vunpack.c.l.s4 1934713408
    %v1303 = vunpack.c.0.s8 %v1302
    %v1304 = vlaneseq
    %v1305 = vshrl.u32 %v1304, 7
    %v1306 = vsub.s32 %v1303, %v1305
    %v1307 = vrot.slane %v1293, %v1306
    %v1308 = vcombine.high %v1292, 0.0
    %v1310 = vunpack.c.l.s4 1934713408
    %v1311 = vunpack.c.0.s8 %v1310
    %v1312 = vlaneseq
    %v1313 = vshrl.u32 %v1312, 7
    %v1314 = vsub.s32 %v1311, %v1313
    %v1315 = vrot.slane %v1292, %v1314
    %v1317 = vunpack.c.l.s4 1934713408
    %v1318 = vunpack.c.0.s8 %v1317
    %v1319 = vlaneseq
    %v1320 = vshrl.u32 %v1319, 7
    %v1321 = vsub.s32 %v1318, %v1320
    %v1322 = vrot.slane %v1308, %v1321
    %v1323 = vcombine.high %v1300, 0.0
    %v1324 = vcombine.high %v1307, 0.0
    %v1325 = vcombine.high %v1315, 0.0
    %v1326 = vcombine.high %v1322, 0.0
    %v1327 = vcombine.high %v746, 0.0
    %v1329 = vunpack.c.l.s4 1983009808
    %v1330 = vunpack.c.0.s8 %v1329
    %v1331 = vlaneseq
    %v1332 = vshrl.u32 %v1331, 7
    %v1333 = vsub.s32 %v1330, %v1332
    %v1334 = vrot.slane %v746, %v1333
    %v1336 = vunpack.c.l.s4 1983009808
    %v1337 = vunpack.c.0.s8 %v1336
    %v1338 = vlaneseq
    %v1339 = vshrl.u32 %v1338, 7
    %v1340 = vsub.s32 %v1337, %v1339
    %v1341 = vrot.slane %v1327, %v1340
    %v1342 = vcombine.high %v1334, 0.0
    %v1344 = vunpack.c.l.s4 1934713408
    %v1345 = vunpack.c.0.s8 %v1344
    %v1346 = vlaneseq
    %v1347 = vshrl.u32 %v1346, 7
    %v1348 = vsub.s32 %v1345, %v1347
    %v1349 = vrot.slane %v1334, %v1348
    %v1351 = vunpack.c.l.s4 1934713408
    %v1352 = vunpack.c.0.s8 %v1351
    %v1353 = vlaneseq
    %v1354 = vshrl.u32 %v1353, 7
    %v1355 = vsub.s32 %v1352, %v1354
    %v1356 = vrot.slane %v1342, %v1355
    %v1357 = vcombine.high %v1341, 0.0
    %v1359 = vunpack.c.l.s4 1934713408
    %v1360 = vunpack.c.0.s8 %v1359
    %v1361 = vlaneseq
    %v1362 = vshrl.u32 %v1361, 7
    %v1363 = vsub.s32 %v1360, %v1362
    %v1364 = vrot.slane %v1341, %v1363
    %v1366 = vunpack.c.l.s4 1934713408
    %v1367 = vunpack.c.0.s8 %v1366
    %v1368 = vlaneseq
    %v1369 = vshrl.u32 %v1368, 7
    %v1370 = vsub.s32 %v1367, %v1369
    %v1371 = vrot.slane %v1357, %v1370
    %v1372 = vcombine.high %v1349, 0.0
    %v1373 = vcombine.high %v1356, 0.0
    %v1374 = vcombine.high %v1364, 0.0
    %v1375 = vcombine.high %v1371, 0.0
    %v1376 = vcombine.high %v747, 0.0
    %v1378 = vunpack.c.l.s4 1983009808
    %v1379 = vunpack.c.0.s8 %v1378
    %v1380 = vlaneseq
    %v1381 = vshrl.u32 %v1380, 7
    %v1382 = vsub.s32 %v1379, %v1381
    %v1383 = vrot.slane %v747, %v1382
    %v1385 = vunpack.c.l.s4 1983009808
    %v1386 = vunpack.c.0.s8 %v1385
    %v1387 = vlaneseq
    %v1388 = vshrl.u32 %v1387, 7
    %v1389 = vsub.s32 %v1386, %v1388
    %v1390 = vrot.slane %v1376, %v1389
    %v1391 = vcombine.high %v1383, 0.0
    %v1393 = vunpack.c.l.s4 1934713408
    %v1394 = vunpack.c.0.s8 %v1393
    %v1395 = vlaneseq
    %v1396 = vshrl.u32 %v1395, 7
    %v1397 = vsub.s32 %v1394, %v1396
    %v1398 = vrot.slane %v1383, %v1397
    %v1400 = vunpack.c.l.s4 1934713408
    %v1401 = vunpack.c.0.s8 %v1400
    %v1402 = vlaneseq
    %v1403 = vshrl.u32 %v1402, 7
    %v1404 = vsub.s32 %v1401, %v1403
    %v1405 = vrot.slane %v1391, %v1404
    %v1406 = vcombine.high %v1390, 0.0
    %v1408 = vunpack.c.l.s4 1934713408
    %v1409 = vunpack.c.0.s8 %v1408
    %v1410 = vlaneseq
    %v1411 = vshrl.u32 %v1410, 7
    %v1412 = vsub.s32 %v1409, %v1411
    %v1413 = vrot.slane %v1390, %v1412
    %v1415 = vunpack.c.l.s4 1934713408
    %v1416 = vunpack.c.0.s8 %v1415
    %v1417 = vlaneseq
    %v1418 = vshrl.u32 %v1417, 7
    %v1419 = vsub.s32 %v1416, %v1418
    %v1420 = vrot.slane %v1406, %v1419
    %v1421 = vcombine.high %v1398, 0.0
    %v1422 = vcombine.high %v1405, 0.0
    %v1423 = vcombine.high %v1413, 0.0
    %v1424 = vcombine.high %v1420, 0.0
    %v1425 = vcombine.high %v748, 0.0
    %v1427 = vunpack.c.l.s4 1983009808
    %v1428 = vunpack.c.0.s8 %v1427
    %v1429 = vlaneseq
    %v1430 = vshrl.u32 %v1429, 7
    %v1431 = vsub.s32 %v1428, %v1430
    %v1432 = vrot.slane %v748, %v1431
    %v1434 = vunpack.c.l.s4 1983009808
    %v1435 = vunpack.c.0.s8 %v1434
    %v1436 = vlaneseq
    %v1437 = vshrl.u32 %v1436, 7
    %v1438 = vsub.s32 %v1435, %v1437
    %v1439 = vrot.slane %v1425, %v1438
    %v1440 = vcombine.high %v1432, 0.0
    %v1442 = vunpack.c.l.s4 1934713408
    %v1443 = vunpack.c.0.s8 %v1442
    %v1444 = vlaneseq
    %v1445 = vshrl.u32 %v1444, 7
    %v1446 = vsub.s32 %v1443, %v1445
    %v1447 = vrot.slane %v1432, %v1446
    %v1449 = vunpack.c.l.s4 1934713408
    %v1450 = vunpack.c.0.s8 %v1449
    %v1451 = vlaneseq
    %v1452 = vshrl.u32 %v1451, 7
    %v1453 = vsub.s32 %v1450, %v1452
    %v1454 = vrot.slane %v1440, %v1453
    %v1455 = vcombine.high %v1439, 0.0
    %v1457 = vunpack.c.l.s4 1934713408
    %v1458 = vunpack.c.0.s8 %v1457
    %v1459 = vlaneseq
    %v1460 = vshrl.u32 %v1459, 7
    %v1461 = vsub.s32 %v1458, %v1460
    %v1462 = vrot.slane %v1439, %v1461
    %v1464 = vunpack.c.l.s4 1934713408
    %v1465 = vunpack.c.0.s8 %v1464
    %v1466 = vlaneseq
    %v1467 = vshrl.u32 %v1466, 7
    %v1468 = vsub.s32 %v1465, %v1467
    %v1469 = vrot.slane %v1455, %v1468
    %v1470 = vcombine.high %v1447, 0.0
    %v1471 = vcombine.high %v1454, 0.0
    %v1472 = vcombine.high %v1462, 0.0
    %v1473 = vcombine.high %v1469, 0.0
    %1478 = vrot.lane.b32.xlu0 %v1127, 16
    %v1479 = vpop.permute.xlu0 %1478
    %1480 = vrot.lane.b32.xlu0 %v1225, 16
    %v1481 = vpop.permute.xlu0 %1480
    %1482 = vrot.lane.b32.xlu0 %v1323, 16
    %v1483 = vpop.permute.xlu0 %1482
    %1484 = vrot.lane.b32.xlu0 %v1421, 16
    %v1485 = vpop.permute.xlu0 %1484
    %1494 = vrot.lane.b32.xlu0 %v1111, 32
    %v1495 = vpop.permute.xlu0 %1494
    %1496 = vrot.lane.b32.xlu0 %v1209, 32
    %v1497 = vpop.permute.xlu0 %1496
    %1498 = vrot.lane.b32.xlu0 %v1307, 32
    %v1499 = vpop.permute.xlu0 %1498
    %1500 = vrot.lane.b32.xlu0 %v1405, 32
    %v1501 = vpop.permute.xlu0 %1500
    %1510 = vrot.lane.b32.xlu0 %v1128, 48
    %v1511 = vpop.permute.xlu0 %1510
    %1512 = vrot.lane.b32.xlu0 %v1226, 48
    %v1513 = vpop.permute.xlu0 %1512
    %1514 = vrot.lane.b32.xlu0 %v1324, 48
    %v1515 = vpop.permute.xlu0 %1514
    %1516 = vrot.lane.b32.xlu0 %v1422, 48
    %v1517 = vpop.permute.xlu0 %1516
    %1526 = vrot.lane.b32.xlu0 %v1119, 64
    %v1527 = vpop.permute.xlu0 %1526
    %1528 = vrot.lane.b32.xlu0 %v1217, 64
    %v1529 = vpop.permute.xlu0 %1528
    %1530 = vrot.lane.b32.xlu0 %v1315, 64
    %v1531 = vpop.permute.xlu0 %1530
    %1532 = vrot.lane.b32.xlu0 %v1413, 64
    %v1533 = vpop.permute.xlu0 %1532
    %1542 = vrot.lane.b32.xlu0 %v1129, 80
    %v1543 = vpop.permute.xlu0 %1542
    %1544 = vrot.lane.b32.xlu0 %v1227, 80
    %v1545 = vpop.permute.xlu0 %1544
    %1546 = vrot.lane.b32.xlu0 %v1325, 80
    %v1547 = vpop.permute.xlu0 %1546
    %1548 = vrot.lane.b32.xlu0 %v1423, 80
    %v1549 = vpop.permute.xlu0 %1548
    %1558 = vrot.lane.b32.xlu0 %v1126, 96
    %v1559 = vpop.permute.xlu0 %1558
    %1560 = vrot.lane.b32.xlu0 %v1224, 96
    %v1561 = vpop.permute.xlu0 %1560
    %1562 = vrot.lane.b32.xlu0 %v1322, 96
    %v1563 = vpop.permute.xlu0 %1562
    %1564 = vrot.lane.b32.xlu0 %v1420, 96
    %v1565 = vpop.permute.xlu0 %1564
    %1574 = vrot.lane.b32.xlu0 %v1130, 112
    %v1575 = vpop.permute.xlu0 %1574
    %1576 = vrot.lane.b32.xlu0 %v1228, 112
    %v1577 = vpop.permute.xlu0 %1576
    %1578 = vrot.lane.b32.xlu0 %v1326, 112
    %v1579 = vpop.permute.xlu0 %1578
    %1580 = vrot.lane.b32.xlu0 %v1424, 112
    %v1581 = vpop.permute.xlu0 %1580
    %1590 = vrot.lane.b32.xlu0 %v1176, 16
    %v1591 = vpop.permute.xlu0 %1590
    %1592 = vrot.lane.b32.xlu0 %v1274, 16
    %v1593 = vpop.permute.xlu0 %1592
    %1594 = vrot.lane.b32.xlu0 %v1372, 16
    %v1595 = vpop.permute.xlu0 %1594
    %1596 = vrot.lane.b32.xlu0 %v1470, 16
    %v1597 = vpop.permute.xlu0 %1596
    %1606 = vrot.lane.b32.xlu0 %v1160, 32
    %v1607 = vpop.permute.xlu0 %1606
    %1608 = vrot.lane.b32.xlu0 %v1258, 32
    %v1609 = vpop.permute.xlu0 %1608
    %1610 = vrot.lane.b32.xlu0 %v1356, 32
    %v1611 = vpop.permute.xlu0 %1610
    %1612 = vrot.lane.b32.xlu0 %v1454, 32
    %v1613 = vpop.permute.xlu0 %1612
    %1622 = vrot.lane.b32.xlu0 %v1177, 48
    %v1623 = vpop.permute.xlu0 %1622
    %1624 = vrot.lane.b32.xlu0 %v1275, 48
    %v1625 = vpop.permute.xlu0 %1624
    %1626 = vrot.lane.b32.xlu0 %v1373, 48
    %v1627 = vpop.permute.xlu0 %1626
    %1628 = vrot.lane.b32.xlu0 %v1471, 48
    %v1629 = vpop.permute.xlu0 %1628
    %1638 = vrot.lane.b32.xlu0 %v1168, 64
    %v1639 = vpop.permute.xlu0 %1638
    %1640 = vrot.lane.b32.xlu0 %v1266, 64
    %v1641 = vpop.permute.xlu0 %1640
    %1642 = vrot.lane.b32.xlu0 %v1364, 64
    %v1643 = vpop.permute.xlu0 %1642
    %1644 = vrot.lane.b32.xlu0 %v1462, 64
    %v1645 = vpop.permute.xlu0 %1644
    %1654 = vrot.lane.b32.xlu0 %v1178, 80
    %v1655 = vpop.permute.xlu0 %1654
    %1656 = vrot.lane.b32.xlu0 %v1276, 80
    %v1657 = vpop.permute.xlu0 %1656
    %1658 = vrot.lane.b32.xlu0 %v1374, 80
    %v1659 = vpop.permute.xlu0 %1658
    %1660 = vrot.lane.b32.xlu0 %v1472, 80
    %v1661 = vpop.permute.xlu0 %1660
    %1670 = vrot.lane.b32.xlu0 %v1175, 96
    %v1671 = vpop.permute.xlu0 %1670
    %1672 = vrot.lane.b32.xlu0 %v1273, 96
    %v1673 = vpop.permute.xlu0 %1672
    %1674 = vrot.lane.b32.xlu0 %v1371, 96
    %v1675 = vpop.permute.xlu0 %1674
    %1676 = vrot.lane.b32.xlu0 %v1469, 96
    %v1677 = vpop.permute.xlu0 %1676
    %1686 = vrot.lane.b32.xlu0 %v1179, 112
    %v1687 = vpop.permute.xlu0 %1686
    %1688 = vrot.lane.b32.xlu0 %v1277, 112
    %v1689 = vpop.permute.xlu0 %1688
    %1690 = vrot.lane.b32.xlu0 %v1375, 112
    %v1691 = vpop.permute.xlu0 %1690
    %1692 = vrot.lane.b32.xlu0 %v1473, 112
    %v1693 = vpop.permute.xlu0 %1692
    %v1698 = vsel %vm660, %v1104, %v1479
    %v1699 = vsel %vm660, %v1202, %v1481
    %v1700 = vsel %vm660, %v1300, %v1483
    %v1701 = vsel %vm660, %v1398, %v1485
    %v1702 = vsel %vm1073, %v1698, %v1495
    %v1703 = vsel %vm1073, %v1699, %v1497
    %v1704 = vsel %vm1073, %v1700, %v1499
    %v1705 = vsel %vm1073, %v1701, %v1501
    %vm1706 = vcmask 392192
    %v1707 = vsel %vm1706, %v1702, %v1511
    %v1708 = vsel %vm1706, %v1703, %v1513
    %v1709 = vsel %vm1706, %v1704, %v1515
    %v1710 = vsel %vm1706, %v1705, %v1517
    %vm1711 = vcmask 523264
    %v1712 = vsel %vm1711, %v1707, %v1527
    %v1713 = vsel %vm1711, %v1708, %v1529
    %v1714 = vsel %vm1711, %v1709, %v1531
    %v1715 = vsel %vm1711, %v1710, %v1533
    %vm1716 = vcmask 654336
    %v1717 = vsel %vm1716, %v1712, %v1543
    %v1718 = vsel %vm1716, %v1713, %v1545
    %v1719 = vsel %vm1716, %v1714, %v1547
    %v1720 = vsel %vm1716, %v1715, %v1549
    %vm1721 = vcmask 785408
    %v1722 = vsel %vm1721, %v1717, %v1559
    %v1723 = vsel %vm1721, %v1718, %v1561
    %v1724 = vsel %vm1721, %v1719, %v1563
    %v1725 = vsel %vm1721, %v1720, %v1565
    %vm1726 = vcmask 916480
    %v1727 = vsel %vm1726, %v1722, %v1575
    %v1728 = vsel %vm1726, %v1723, %v1577
    %v1729 = vsel %vm1726, %v1724, %v1579
    %v1730 = vsel %vm1726, %v1725, %v1581
    %v1731 = vsel %vm660, %v1153, %v1591
    %v1732 = vsel %vm660, %v1251, %v1593
    %v1733 = vsel %vm660, %v1349, %v1595
    %v1734 = vsel %vm660, %v1447, %v1597
    %v1735 = vsel %vm1073, %v1731, %v1607
    %v1736 = vsel %vm1073, %v1732, %v1609
    %v1737 = vsel %vm1073, %v1733, %v1611
    %v1738 = vsel %vm1073, %v1734, %v1613
    %v1739 = vsel %vm1706, %v1735, %v1623
    %v1740 = vsel %vm1706, %v1736, %v1625
    %v1741 = vsel %vm1706, %v1737, %v1627
    %v1742 = vsel %vm1706, %v1738, %v1629
    %v1743 = vsel %vm1711, %v1739, %v1639
    %v1744 = vsel %vm1711, %v1740, %v1641
    %v1745 = vsel %vm1711, %v1741, %v1643
    %v1746 = vsel %vm1711, %v1742, %v1645
    %v1747 = vsel %vm1716, %v1743, %v1655
    %v1748 = vsel %vm1716, %v1744, %v1657
    %v1749 = vsel %vm1716, %v1745, %v1659
    %v1750 = vsel %vm1716, %v1746, %v1661
    %v1751 = vsel %vm1721, %v1747, %v1671
    %v1752 = vsel %vm1721, %v1748, %v1673
    %v1753 = vsel %vm1721, %v1749, %v1675
    %v1754 = vsel %vm1721, %v1750, %v1677
    %v1755 = vsel %vm1726, %v1751, %v1687
    %v1756 = vsel %vm1726, %v1752, %v1689
    %v1757 = vsel %vm1726, %v1753, %v1691
    %v1758 = vsel %vm1726, %v1754, %v1693
    %v1767 = vcombine.low %v1727, %v1755
    %v1769 = vunpack.c.l.s4 1966171168
    %v1770 = vunpack.c.0.s8 %v1769
    %v1771 = vlaneseq
    %v1772 = vshrl.u32 %v1771, 7
    %v1773 = vsub.s32 %v1770, %v1772
    %v1774 = vrot.slane %v1767, %v1773
    %v1776 = vunpack.c.l.s4 1966171168
    %v1777 = vunpack.c.0.s8 %v1776
    %v1778 = vlaneseq
    %v1779 = vshrl.u32 %v1778, 7
    %v1780 = vsub.s32 %v1777, %v1779
    %v1781 = vrot.slane %v1774, %v1780
    %v1782 = vcombine.low %v1728, %v1756
    %v1784 = vunpack.c.l.s4 1966171168
    %v1785 = vunpack.c.0.s8 %v1784
    %v1786 = vlaneseq
    %v1787 = vshrl.u32 %v1786, 7
    %v1788 = vsub.s32 %v1785, %v1787
    %v1789 = vrot.slane %v1782, %v1788
    %v1791 = vunpack.c.l.s4 1966171168
    %v1792 = vunpack.c.0.s8 %v1791
    %v1793 = vlaneseq
    %v1794 = vshrl.u32 %v1793, 7
    %v1795 = vsub.s32 %v1792, %v1794
    %v1796 = vrot.slane %v1789, %v1795
    %v1797 = vcombine.low %v1729, %v1757
    %v1799 = vunpack.c.l.s4 1966171168
    %v1800 = vunpack.c.0.s8 %v1799
    %v1801 = vlaneseq
    %v1802 = vshrl.u32 %v1801, 7
    %v1803 = vsub.s32 %v1800, %v1802
    %v1804 = vrot.slane %v1797, %v1803
    %v1806 = vunpack.c.l.s4 1966171168
    %v1807 = vunpack.c.0.s8 %v1806
    %v1808 = vlaneseq
    %v1809 = vshrl.u32 %v1808, 7
    %v1810 = vsub.s32 %v1807, %v1809
    %v1811 = vrot.slane %v1804, %v1810
    %v1812 = vcombine.low %v1730, %v1758
    %v1814 = vunpack.c.l.s4 1966171168
    %v1815 = vunpack.c.0.s8 %v1814
    %v1816 = vlaneseq
    %v1817 = vshrl.u32 %v1816, 7
    %v1818 = vsub.s32 %v1815, %v1817
    %v1819 = vrot.slane %v1812, %v1818
    %v1821 = vunpack.c.l.s4 1966171168
    %v1822 = vunpack.c.0.s8 %v1821
    %v1823 = vlaneseq
    %v1824 = vshrl.u32 %v1823, 7
    %v1825 = vsub.s32 %v1822, %v1824
    %v1826 = vrot.slane %v1819, %v1825
    %v1831 = vlaneseq
    %vm1832 = vcmp.ge.s32.totalorder %v1831, 0
    %vm1833 = vcmp.lt.s32.totalorder %v1831, 256
    %vm1834 = vmand %vm1832, %vm1833
    %1835 = vst.msk [vmem:[#allocation11] sm:$0x3] %vm1834, %v1781
    %1836 = vst.msk [vmem:[#allocation11 + $0x2] sm:$0x3] %vm1834, %v1796
    %1837 = vst.msk [vmem:[#allocation11 + $0x4] sm:$0x3] %vm1834, %v1811
    %1838 = vst.msk [vmem:[#allocation11 + $0x6] sm:$0x3] %vm1834, %v1826
    // Predicated region
    $region22: #{tpu_custom_call.1} parent=1 // pred_check
      _
    $region23: #{tpu_custom_call.1} parent=1 // pred_check_branch
      %1840 = sbr.rel (0) target = $region25
    $region24: #{tpu_custom_call.1} parent=1 // pred_region
      %s1842 = ssub.s32 1024, 1024
      %1843 = vsyncadd [#allocation7], %s1842
      %s1844 = sshll.u32 [#allocation10], 4
      %s1845 = int_to_ptr.vmem [resolvable:$true] %s1844
      %1850 = dma.vmem_to_hbm [thread:$0]  %s1845, 1024, %s2, [#allocation7], 128, 128, 8
    $region25: #{tpu_custom_call.1} parent=1 // pred_fallthru
      _
    // Predicated region
    $region26: #{tpu_custom_call.1} parent=1 // pred_check
      _
    $region27: #{tpu_custom_call.1} parent=1 // pred_check_branch
      %1852 = sbr.rel (0) target = $region29
    $region28: #{tpu_custom_call.1} parent=1 // pred_region
      %s1854 = ssub.s32 128, 128
      %1855 = vsyncadd [#allocation12], %s1854
      %s1856 = sshll.u32 [#allocation11], 4
      %s1857 = int_to_ptr.vmem [resolvable:$true] %s1856
      %1862 = dma.vmem_to_hbm [thread:$0]  %s1857, 128, %s3, [#allocation12], 32, 32, 2
    $region29: #{tpu_custom_call.1} parent=1 // pred_fallthru
      _
    // Predicated region
    $region30: #{tpu_custom_call.1} parent=1 // pred_check
      _
    $region31: #{tpu_custom_call.1} parent=1 // pred_check_branch
      %1864 = sbr.rel (0) target = $region33
    $region32: #{tpu_custom_call.1} parent=1 // pred_region
      %1865 = dma.done [#allocation7], 1024
    $region33: #{tpu_custom_call.1} parent=1 // pred_fallthru
      _
    // Predicated region
    $region34: #{tpu_custom_call.1} parent=1 // pred_check
      _
    $region35: #{tpu_custom_call.1} parent=1 // pred_check_branch
      %1867 = sbr.rel (0) target = $region37
    $region36: #{tpu_custom_call.1} parent=1 // pred_region
      %1868 = dma.done [#allocation12], 128
    $region37: #{tpu_custom_call.1} parent=1 // pred_fallthru
      _
    %1869 = vsyncpa [#allocation6], 1
    %1870 = vsyncpa [#allocation9], 1
    %1871 = vsyncpa [#allocation7], 1
    %1872 = vsyncpa [#allocation12], 1

</llo_original>
